<compile_context>
chip_gen: v7x
topology: tpu7x:2x2x1
jax: 0.10.0
libtpu: 0.0.40
codegen_flags: <defaults>
</compile_context>

<pallas_src>
import numpy as np

import jax
import jax.numpy as jnp
from jax.experimental import pallas as pl
from jax.experimental.pallas import tpu as pltpu

# Matmul operand dtype. bf16 operands + f32 accumulation is MXU-native on v6e/v7x.
# (All elementwise / cell-state math stays f32, per the v5e guidance.)
MXU_DTYPE = jnp.bfloat16


# -----------------------------------------------------------------------------
# Pallas kernel: fused bidirectional LSTM recurrence over one time chunk,
# with the final classifier fused into the last grid step.
# -----------------------------------------------------------------------------
def _bilstm_fused_kernel(gxf_ref, gxb_ref, whhf_ref, whhb_ref,
                         fcwf_ref, fcwb_ref, fcb_ref,
                         of_ref, ob_ref, logits_ref,
                         hf_sc, cf_sc, hb_sc, cb_sc):
    c = pl.program_id(0)
    nc = pl.num_programs(0)

    @pl.when(c == 0)
    def _init():
        hf_sc[...] = jnp.zeros_like(hf_sc)
        cf_sc[...] = jnp.zeros_like(cf_sc)
        hb_sc[...] = jnp.zeros_like(hb_sc)
        cb_sc[...] = jnp.zeros_like(cb_sc)

    H = hf_sc.shape[-1]
    t_blk = gxf_ref.shape[0]

    def gate_math(gates, c_prev):
        # gates: (B, 4H) f32 pre-activations, PyTorch gate order [i, f, g, o].
        i_g = jax.nn.sigmoid(gates[:, 0 * H:1 * H])
        f_g = jax.nn.sigmoid(gates[:, 1 * H:2 * H])
        g_g = jnp.tanh(gates[:, 2 * H:3 * H])
        o_g = jax.nn.sigmoid(gates[:, 3 * H:4 * H])
        c_new = f_g * c_prev + i_g * g_g
        h_new = o_g * jnp.tanh(c_new)
        return h_new, c_new

    def step(i, carry):
        # -------- forward direction: local time i (global time c*t_blk + i) --------
        gates_f = gxf_ref[i] + jnp.dot(
            hf_sc[...].astype(whhf_ref.dtype), whhf_ref[...],
            preferred_element_type=jnp.float32)
        h_f, c_f = gate_math(gates_f, cf_sc[...])
        hf_sc[...] = h_f
        cf_sc[...] = c_f
        of_ref[i] = h_f.astype(of_ref.dtype)

        # -------- backward direction --------
        # Its i-th recurrence step consumes global time T-1-(c*t_blk+i), which is
        # local index (t_blk-1-i) inside the block selected by the reversed
        # index_map (block nc-1-c).  Output goes to the same slot so o_b ends up
        # in natural time order without any host-side reversal.
        j = t_blk - 1 - i
        gates_b = gxb_ref[j] + jnp.dot(
            hb_sc[...].astype(whhb_ref.dtype), whhb_ref[...],
            preferred_element_type=jnp.float32)
        h_b, c_b = gate_math(gates_b, cb_sc[...])
        hb_sc[...] = h_b
        cb_sc[...] = c_b
        ob_ref[j] = h_b.astype(ob_ref.dtype)
        return carry

    jax.lax.fori_loop(0, t_blk, step, 0, unroll=True)

    @pl.when(c == nc - 1)
    def _finalize():
        # Fused classifier on the final hidden states (h[-2], h[-1]); the concat
        # is avoided by splitting fc_w^T into its forward/backward halves.  The
        # output dim is padded to 128 lanes so the store is lane-dense.
        logits = (
            jnp.dot(hf_sc[...].astype(fcwf_ref.dtype), fcwf_ref[...],
                    preferred_element_type=jnp.float32)
            + jnp.dot(hb_sc[...].astype(fcwb_ref.dtype), fcwb_ref[...],
                      preferred_element_type=jnp.float32)
            + fcb_ref[...]
        )
        logits_ref[...] = logits.astype(logits_ref.dtype)


def bilstm_layer_pallas(gx_f, gx_b, w_hhT_f, w_hhT_b, fc_wT_f, fc_wT_b, fc_b2d,
                        *, t_blk):
    """Fused bidirectional LSTM layer.

    gx_f, gx_b : (T, B, 4H) f32 precomputed input projections (x @ W_ih^T + b).
    w_hhT_*    : (H, 4H)   bf16 pre-transposed recurrent weights.
    fc_wT_*    : (H, Opad) bf16 classifier weight halves (padded to 128 lanes).
    fc_b2d     : (1, Opad) f32 classifier bias.
    Returns (o_f (T,B,H), o_b (T,B,H), logits (B,Opad)).  Only the last layer's
    logits are meaningful (they use that layer's final hidden states).
    """
    T, B, H4 = gx_f.shape
    H = H4 // 4
    o_pad = fc_wT_f.shape[-1]
    assert T % t_blk == 0, "time block must divide T"
    nc = T // t_blk

    grid_spec = pltpu.PrefetchScalarGridSpec(
        num_scalar_prefetch=0,
        grid=(nc,),
        in_specs=[
            pl.BlockSpec((t_blk, B, H4), lambda c: (c, 0, 0)),           # gx_f
            pl.BlockSpec((t_blk, B, H4), lambda c: (nc - 1 - c, 0, 0)),  # gx_b (reversed)
            # Grid-invariant weights.  For large H on v7x (64 MiB VMEM), add
            # pipeline_mode=pl.Buffered(1) here to avoid double-buffering them.
            pl.BlockSpec((H, H4), lambda c: (0, 0)),                     # w_hh^T fwd
            pl.BlockSpec((H, H4), lambda c: (0, 0)),                     # w_hh^T bwd
            pl.BlockSpec((H, o_pad), lambda c: (0, 0)),                  # fc_w^T fwd half
            pl.BlockSpec((H, o_pad), lambda c: (0, 0)),                  # fc_w^T bwd half
            pl.BlockSpec((1, o_pad), lambda c: (0, 0)),                  # fc bias
        ],
        out_specs=[
            pl.BlockSpec((t_blk, B, H), lambda c: (c, 0, 0)),            # o_f
            pl.BlockSpec((t_blk, B, H), lambda c: (nc - 1 - c, 0, 0)),   # o_b (natural order)
            pl.BlockSpec((B, o_pad), lambda c: (0, 0)),                  # logits (last step)
        ],
        scratch_shapes=[pltpu.VMEM((B, H), jnp.float32)] * 4,            # h_f, c_f, h_b, c_b
    )
    return pl.pallas_call(
        _bilstm_fused_kernel,
        out_shape=(
            jax.ShapeDtypeStruct((T, B, H), jnp.float32),
            jax.ShapeDtypeStruct((T, B, H), jnp.float32),
            jax.ShapeDtypeStruct((B, o_pad), jnp.float32),
        ),
        grid_spec=grid_spec,
        compiler_params=pltpu.CompilerParams(
            dimension_semantics=("arbitrary",)),   # time recurrence -> sequential
    )(gx_f, gx_b, w_hhT_f, w_hhT_b, fc_wT_f, fc_wT_b, fc_b2d)


# -----------------------------------------------------------------------------
# Hoisted input projection (MXU-dense, M = T*B) -- done once per layer/direction
# outside the recurrence.  `parts` lets us consume [o_f | o_b] without ever
# materializing the concatenated (T, B, 2H) tensor.
# -----------------------------------------------------------------------------
def _input_projection(parts, w_ihT, bias):
    T, B = parts[0].shape[:2]
    H4 = w_ihT.shape[1]
    acc = jnp.zeros((T * B, H4), jnp.float32)
    off = 0
    for p in parts:
        d = p.shape[-1]
        acc = acc + jnp.dot(
            p.reshape(T * B, d).astype(MXU_DTYPE),
            w_ihT[off:off + d].astype(MXU_DTYPE),
            preferred_element_type=jnp.float32)
        off += d
    return (acc + bias.astype(jnp.float32)).reshape(T, B, H4)


def _pick_time_block(T, max_blk):
    for tb in range(min(T, max_blk), 0, -1):
        if T % tb == 0:
            return tb
    return 1


# -----------------------------------------------------------------------------
# Full forward pass (embedding gather + layer orchestration is glue)
# -----------------------------------------------------------------------------
def rnn_classification_forward(token_ids, params, *, n_layers=2, t_blk=None):
    # embedding: (B, T) int32 -> (B, T, E); permute -> (T, B, E); dropout = identity.
    emb = params["embedding"][token_ids]
    x = jnp.transpose(emb, (1, 0, 2)).astype(jnp.float32)   # (T, B, E)
    T, B, _ = x.shape
    if t_blk is None:
        t_blk = _pick_time_block(T, 16)

    out_dim = params["fc_w"].shape[0]
    H = params["lstm_l0"]["w_hh_f"].shape[1]
    o_pad = ((out_dim + 127) // 128) * 128

    # Pad the classifier output dim to 128 lanes and pre-split into fwd/bwd halves.
    fc_w_pad = jnp.zeros((o_pad, 2 * H), jnp.float32).at[:out_dim].set(params["fc_w"])
    fc_b_pad = jnp.zeros((1, o_pad), jnp.float32).at[0, :out_dim].set(params["fc_b"])
    fc_wT = fc_w_pad.T                                       # (2H, o_pad)
    fc_wT_f = fc_wT[:H].astype(MXU_DTYPE)
    fc_wT_b = fc_wT[H:].astype(MXU_DTYPE)

    parts = [x]
    logits_padded = None
    for l in range(n_layers):
        p = params[f"lstm_l{l}"]
        # Hoisted input projection (one big matmul per direction, in XLA).
        gx_f = _input_projection(parts, p["w_ih_f"].T, p["b_f"])
        gx_b = _input_projection(parts, p["w_ih_b"].T, p["b_b"])
        o_f, o_b, logits_padded = bilstm_layer_pallas(
            gx_f, gx_b,
            p["w_hh_f"].T.astype(MXU_DTYPE), p["w_hh_b"].T.astype(MXU_DTYPE),
            fc_wT_f, fc_wT_b, fc_b_pad, t_blk=t_blk)
        parts = [o_f, o_b]   # next layer consumes [o_f | o_b] without a concat
        # TODO(synk): inter-layer dropout (p=0.5) is identity in eval mode.

    # Only the last layer's logits use its final hidden states -> matches
    # fc(cat(h[-2], h[-1])) of the PyTorch module.
    return logits_padded[:, :out_dim]


# -----------------------------------------------------------------------------
# Pure-JAX reference (classic per-step scan formulation, host-side reversal and
# concats).  It uses the same bf16-matmul-operand / f32-accumulate policy as the
# kernel so the comparison isolates kernel-structure correctness.
# -----------------------------------------------------------------------------
def _lstm_ref_scan(x_seq, w_ih, w_hh, bias):
    T, B, D = x_seq.shape
    H = w_hh.shape[1]
    w_ihT = w_ih.T.astype(MXU_DTYPE)
    w_hhT = w_hh.T.astype(MXU_DTYPE)

    def step(carry, x_t):
        h, c = carry
        g = (jnp.dot(x_t.astype(MXU_DTYPE), w_ihT, preferred_element_type=jnp.float32)
             + jnp.dot(h.astype(MXU_DTYPE), w_hhT, preferred_element_type=jnp.float32)
             + bias)
        i = jax.nn.sigmoid(g[:, :H])
        f = jax.nn.sigmoid(g[:, H:2 * H])
        gg = jnp.tanh(g[:, 2 * H:3 * H])
        o = jax.nn.sigmoid(g[:, 3 * H:4 * H])
        c = f * c + i * gg
        h = o * jnp.tanh(c)
        return (h, c), h

    init = (jnp.zeros((B, H), jnp.float32), jnp.zeros((B, H), jnp.float32))
    (h, _), ys = jax.lax.scan(step, init, x_seq)
    return ys, h


def rnn_classification_ref(token_ids, params, *, n_layers=2):
    emb = params["embedding"][token_ids]
    x = jnp.transpose(emb, (1, 0, 2)).astype(jnp.float32)
    layer_in = x
    h_f = h_b = None
    for l in range(n_layers):
        p = params[f"lstm_l{l}"]
        o_f, h_f = _lstm_ref_scan(layer_in, p["w_ih_f"], p["w_hh_f"], p["b_f"])
        o_b_rev, h_b = _lstm_ref_scan(layer_in[::-1], p["w_ih_b"], p["w_hh_b"], p["b_b"])
        layer_in = jnp.concatenate([o_f, o_b_rev[::-1]], axis=-1)
    h_cat = jnp.concatenate([h_f, h_b], axis=-1)
    return (jnp.dot(h_cat.astype(MXU_DTYPE), params["fc_w"].T.astype(MXU_DTYPE),
                    preferred_element_type=jnp.float32)
            + params["fc_b"])


# -----------------------------------------------------------------------------
# Deterministic parameter construction (nn.LSTM / nn.Linear / nn.Embedding shapes)
# -----------------------------------------------------------------------------
def make_params(key, vocab, emb_dim, hidden, out_dim, n_layers=2):
    params = {}
    keys = jax.random.split(key, 4 + 8 * n_layers)
    k_it = iter(keys)

    params["embedding"] = jax.random.normal(next(k_it), (vocab, emb_dim), jnp.float32)

    k = 1.0 / np.sqrt(hidden)
    for l in range(n_layers):
        in_dim = emb_dim if l == 0 else 2 * hidden
        lp = {}
        for tag in ("f", "b"):
            lp[f"w_ih_{tag}"] = jax.random.uniform(
                next(k_it), (4 * hidden, in_dim), jnp.float32, -k, k)
            lp[f"w_hh_{tag}"] = jax.random.uniform(
                next(k_it), (4 * hidden, hidden), jnp.float32, -k, k)
            b_ih = jax.random.uniform(next(k_it), (4 * hidden,), jnp.float32, -k, k)
            b_hh = jax.random.uniform(next(k_it), (4 * hidden,), jnp.float32, -k, k)
            lp[f"b_{tag}"] = b_ih + b_hh
        params[f"lstm_l{l}"] = lp

    fc_in = 2 * hidden
    kf = 1.0 / np.sqrt(fc_in)
    params["fc_w"] = jax.random.uniform(next(k_it), (out_dim, fc_in), jnp.float32, -kf, kf)
    params["fc_b"] = jax.random.uniform(next(k_it), (out_dim,), jnp.float32, -kf, kf)
    return params


if __name__ == "__main__":
    VOCAB, EMB, HID, OUT = 50, 32, 32, 4
    BATCH, SEQ = 2, 8

    key = jax.random.PRNGKey(0)
    k_par, k_tok = jax.random.split(key)
    params = make_params(k_par, VOCAB, EMB, HID, OUT, n_layers=2)
    token_ids = jax.random.randint(k_tok, (BATCH, SEQ), 0, VOCAB, dtype=jnp.int32)

    # t_blk=4 -> grid of 2 time chunks, exercising cross-chunk state carry and
    # the reversed index_map for the backward direction.
    out = rnn_classification_forward(token_ids, params, n_layers=2, t_blk=4)
    out = jax.block_until_ready(out)

    ref = jax.block_until_ready(rnn_classification_ref(token_ids, params, n_layers=2))
    np.testing.assert_allclose(np.asarray(out), np.asarray(ref), rtol=5e-3, atol=5e-3)
    assert out.shape == (BATCH, OUT)

    print("KERNEL_OK")
</pallas_src>

<mosaic_0001>
module attributes {stable_mosaic.version = 11 : i64} {
  func.func @_bilstm_fused_kernel(%arg0: i32, %arg1: memref<4x2x128xf32, #tpu.memory_space<vmem>>, %arg2: memref<4x2x128xf32, #tpu.memory_space<vmem>>, %arg3: memref<32x128xbf16, #tpu.memory_space<vmem>>, %arg4: memref<32x128xbf16, #tpu.memory_space<vmem>>, %arg5: memref<32x128xbf16, #tpu.memory_space<vmem>>, %arg6: memref<32x128xbf16, #tpu.memory_space<vmem>>, %arg7: memref<1x128xf32, #tpu.memory_space<vmem>>, %arg8: memref<4x2x32xf32, #tpu.memory_space<vmem>>, %arg9: memref<4x2x32xf32, #tpu.memory_space<vmem>>, %arg10: memref<2x128xf32, #tpu.memory_space<vmem>>, %arg11: memref<2x32xf32, #tpu.memory_space<vmem>>, %arg12: memref<2x32xf32, #tpu.memory_space<vmem>>, %arg13: memref<2x32xf32, #tpu.memory_space<vmem>>, %arg14: memref<2x32xf32, #tpu.memory_space<vmem>>) attributes {dimension_semantics = [#tpu.dimension_semantics<arbitrary>], iteration_bounds = array<i64: 2>, scalar_prefetch = 0 : i64, scratch_operands = 4 : i64, tpu.core_type = #tpu.core_type<tc>, window_params = [{transform_indices = @transform_0, window_bounds = array<i64: 4, 2, 128>}, {transform_indices = @transform_1, window_bounds = array<i64: 4, 2, 128>}, {pipeline_mode = #tpu.pipeline_mode<synchronous>, transform_indices = @transform_2, window_bounds = array<i64: 32, 128>}, {pipeline_mode = #tpu.pipeline_mode<synchronous>, transform_indices = @transform_3, window_bounds = array<i64: 32, 128>}, {pipeline_mode = #tpu.pipeline_mode<synchronous>, transform_indices = @transform_4, window_bounds = array<i64: 32, 128>}, {pipeline_mode = #tpu.pipeline_mode<synchronous>, transform_indices = @transform_5, window_bounds = array<i64: 32, 128>}, {pipeline_mode = #tpu.pipeline_mode<synchronous>, transform_indices = @transform_6, window_bounds = array<i64: 1, 128>}, {transform_indices = @transform_7, window_bounds = array<i64: 4, 2, 32>}, {transform_indices = @transform_8, window_bounds = array<i64: 4, 2, 32>}, {pipeline_mode = #tpu.pipeline_mode<synchronous>, transform_indices = @transform_9, window_bounds = array<i64: 2, 128>}]} {
    %c0_i32 = arith.constant 0 : i32
    %0 = arith.cmpi eq, %arg0, %c0_i32 : i32
    %1 = arith.extui %0 : i1 to i32
    %c0_i32_0 = arith.constant 0 : i32
    %2 = arith.cmpi ne, %1, %c0_i32_0 : i32
    scf.if %2 {
      %cst_150 = arith.constant 0.000000e+00 : f32
      %330 = vector.broadcast %cst_150 : f32 to vector<2x32xf32>
      %c0_151 = arith.constant 0 : index
      %c0_152 = arith.constant 0 : index
      %331 = vector.load %arg11[%c0_151, %c0_152] : memref<2x32xf32, #tpu.memory_space<vmem>>, vector<2x32xf32>
      tpu.vector_store %arg11[%c0_151, %c0_152], %330 {strides = array<i32>} : memref<2x32xf32, #tpu.memory_space<vmem>>, vector<2x32xf32>,
      %cst_153 = arith.constant 0.000000e+00 : f32
      %332 = vector.broadcast %cst_153 : f32 to vector<2x32xf32>
      %c0_154 = arith.constant 0 : index
      %c0_155 = arith.constant 0 : index
      %333 = vector.load %arg12[%c0_154, %c0_155] : memref<2x32xf32, #tpu.memory_space<vmem>>, vector<2x32xf32>
      tpu.vector_store %arg12[%c0_154, %c0_155], %332 {strides = array<i32>} : memref<2x32xf32, #tpu.memory_space<vmem>>, vector<2x32xf32>,
      %cst_156 = arith.constant 0.000000e+00 : f32
      %334 = vector.broadcast %cst_156 : f32 to vector<2x32xf32>
      %c0_157 = arith.constant 0 : index
      %c0_158 = arith.constant 0 : index
      %335 = vector.load %arg13[%c0_157, %c0_158] : memref<2x32xf32, #tpu.memory_space<vmem>>, vector<2x32xf32>
      tpu.vector_store %arg13[%c0_157, %c0_158], %334 {strides = array<i32>} : memref<2x32xf32, #tpu.memory_space<vmem>>, vector<2x32xf32>,
      %cst_159 = arith.constant 0.000000e+00 : f32
      %336 = vector.broadcast %cst_159 : f32 to vector<2x32xf32>
      %c0_160 = arith.constant 0 : index
      %c0_161 = arith.constant 0 : index
      %337 = vector.load %arg14[%c0_160, %c0_161] : memref<2x32xf32, #tpu.memory_space<vmem>>, vector<2x32xf32>
      tpu.vector_store %arg14[%c0_160, %c0_161], %336 {strides = array<i32>} : memref<2x32xf32, #tpu.memory_space<vmem>>, vector<2x32xf32>,
    } else {
    }
    %c0_i32_1 = arith.constant 0 : i32
    %3 = arith.index_cast %c0_i32_1 : i32 to index
    %c0 = arith.constant 0 : index
    %c0_2 = arith.constant 0 : index
    %4 = vector.load %arg1[%3, %c0, %c0_2] : memref<4x2x128xf32, #tpu.memory_space<vmem>>, vector<1x2x128xf32>
    %5 = vector.shape_cast %4 : vector<1x2x128xf32> to vector<2x128xf32>
    %c0_3 = arith.constant 0 : index
    %c0_4 = arith.constant 0 : index
    %6 = vector.load %arg11[%c0_3, %c0_4] : memref<2x32xf32, #tpu.memory_space<vmem>>, vector<2x32xf32>
    %7 = arith.truncf %6 : vector<2x32xf32> to vector<2x32xbf16>
    %c0_5 = arith.constant 0 : index
    %c0_6 = arith.constant 0 : index
    %8 = vector.load %arg3[%c0_5, %c0_6] : memref<32x128xbf16, #tpu.memory_space<vmem>>, vector<32x128xbf16>
    %cst = arith.constant dense<0.000000e+00> : vector<2x128xf32>
    %9 = tpu.matmul %7, %8, %cst {dimension_numbers = #tpu.dot_dimension_numbers<[1], [0], [0], [1], [0, 0, 1, 1], [], []>} : vector<2x32xbf16>, vector<32x128xbf16>, vector<2x128xf32> -> vector<2x128xf32>
    %10 = arith.addf %5, %9 : vector<2x128xf32>
    %c0_7 = arith.constant 0 : index
    %c0_8 = arith.constant 0 : index
    %11 = vector.load %arg12[%c0_7, %c0_8] : memref<2x32xf32, #tpu.memory_space<vmem>>, vector<2x32xf32>
    %12 = vector.extract_strided_slice %10 {offsets = [0, 0], sizes = [2, 32], strides = [1, 1]} : vector<2x128xf32> to vector<2x32xf32>
    %13 = arith.negf %12 : vector<2x32xf32>
    %14 = math.exp %13 : vector<2x32xf32>
    %cst_9 = arith.constant 1.000000e+00 : f32
    %15 = vector.broadcast %cst_9 : f32 to vector<2x32xf32>
    %16 = arith.addf %15, %14 : vector<2x32xf32>
    %17 = arith.divf %15, %16 : vector<2x32xf32>
    %18 = vector.extract_strided_slice %10 {offsets = [0, 32], sizes = [2, 32], strides = [1, 1]} : vector<2x128xf32> to vector<2x32xf32>
    %19 = arith.negf %18 : vector<2x32xf32>
    %20 = math.exp %19 : vector<2x32xf32>
    %cst_10 = arith.constant 1.000000e+00 : f32
    %21 = vector.broadcast %cst_10 : f32 to vector<2x32xf32>
    %22 = arith.addf %21, %20 : vector<2x32xf32>
    %23 = arith.divf %21, %22 : vector<2x32xf32>
    %24 = vector.extract_strided_slice %10 {offsets = [0, 64], sizes = [2, 32], strides = [1, 1]} : vector<2x128xf32> to vector<2x32xf32>
    %25 = math.tanh %24 : vector<2x32xf32>
    %26 = vector.extract_strided_slice %10 {offsets = [0, 96], sizes = [2, 32], strides = [1, 1]} : vector<2x128xf32> to vector<2x32xf32>
    %27 = arith.negf %26 : vector<2x32xf32>
    %28 = math.exp %27 : vector<2x32xf32>
    %cst_11 = arith.constant 1.000000e+00 : f32
    %29 = vector.broadcast %cst_11 : f32 to vector<2x32xf32>
    %30 = arith.addf %29, %28 : vector<2x32xf32>
    %31 = arith.divf %29, %30 : vector<2x32xf32>
    %32 = arith.mulf %23, %11 : vector<2x32xf32>
    %33 = arith.mulf %17, %25 : vector<2x32xf32>
    %34 = arith.addf %32, %33 : vector<2x32xf32>
    %35 = math.tanh %34 : vector<2x32xf32>
    %36 = arith.mulf %31, %35 : vector<2x32xf32>
    %c0_12 = arith.constant 0 : index
    %c0_13 = arith.constant 0 : index
    %37 = vector.load %arg11[%c0_12, %c0_13] : memref<2x32xf32, #tpu.memory_space<vmem>>, vector<2x32xf32>
    tpu.vector_store %arg11[%c0_12, %c0_13], %36 {strides = array<i32>} : memref<2x32xf32, #tpu.memory_space<vmem>>, vector<2x32xf32>,
    %c0_14 = arith.constant 0 : index
    %c0_15 = arith.constant 0 : index
    %38 = vector.load %arg12[%c0_14, %c0_15] : memref<2x32xf32, #tpu.memory_space<vmem>>, vector<2x32xf32>
    tpu.vector_store %arg12[%c0_14, %c0_15], %34 {strides = array<i32>} : memref<2x32xf32, #tpu.memory_space<vmem>>, vector<2x32xf32>,
    %39 = arith.index_cast %c0_i32_1 : i32 to index
    %c0_16 = arith.constant 0 : index
    %c0_17 = arith.constant 0 : index
    %40 = vector.load %arg8[%39, %c0_16, %c0_17] : memref<4x2x32xf32, #tpu.memory_space<vmem>>, vector<1x2x32xf32>
    %41 = vector.shape_cast %40 : vector<1x2x32xf32> to vector<2x32xf32>
    %42 = vector.shape_cast %36 : vector<2x32xf32> to vector<1x2x32xf32>
    tpu.vector_store %arg8[%39, %c0_16, %c0_17], %42 {strides = array<i32>} : memref<4x2x32xf32, #tpu.memory_space<vmem>>, vector<1x2x32xf32>,
    %c3_i32 = arith.constant 3 : i32
    %43 = arith.subi %c3_i32, %c0_i32_1 : i32
    %44 = arith.index_cast %43 : i32 to index
    %c0_18 = arith.constant 0 : index
    %c0_19 = arith.constant 0 : index
    %45 = vector.load %arg2[%44, %c0_18, %c0_19] : memref<4x2x128xf32, #tpu.memory_space<vmem>>, vector<1x2x128xf32>
    %46 = vector.shape_cast %45 : vector<1x2x128xf32> to vector<2x128xf32>
    %c0_20 = arith.constant 0 : index
    %c0_21 = arith.constant 0 : index
    %47 = vector.load %arg13[%c0_20, %c0_21] : memref<2x32xf32, #tpu.memory_space<vmem>>, vector<2x32xf32>
    %48 = arith.truncf %47 : vector<2x32xf32> to vector<2x32xbf16>
    %c0_22 = arith.constant 0 : index
    %c0_23 = arith.constant 0 : index
    %49 = vector.load %arg4[%c0_22, %c0_23] : memref<32x128xbf16, #tpu.memory_space<vmem>>, vector<32x128xbf16>
    %cst_24 = arith.constant dense<0.000000e+00> : vector<2x128xf32>
    %50 = tpu.matmul %48, %49, %cst_24 {dimension_numbers = #tpu.dot_dimension_numbers<[1], [0], [0], [1], [0, 0, 1, 1], [], []>} : vector<2x32xbf16>, vector<32x128xbf16>, vector<2x128xf32> -> vector<2x128xf32>
    %51 = arith.addf %46, %50 : vector<2x128xf32>
    %c0_25 = arith.constant 0 : index
    %c0_26 = arith.constant 0 : index
    %52 = vector.load %arg14[%c0_25, %c0_26] : memref<2x32xf32, #tpu.memory_space<vmem>>, vector<2x32xf32>
    %53 = vector.extract_strided_slice %51 {offsets = [0, 0], sizes = [2, 32], strides = [1, 1]} : vector<2x128xf32> to vector<2x32xf32>
    %54 = arith.negf %53 : vector<2x32xf32>
    %55 = math.exp %54 : vector<2x32xf32>
    %cst_27 = arith.constant 1.000000e+00 : f32
    %56 = vector.broadcast %cst_27 : f32 to vector<2x32xf32>
    %57 = arith.addf %56, %55 : vector<2x32xf32>
    %58 = arith.divf %56, %57 : vector<2x32xf32>
    %59 = vector.extract_strided_slice %51 {offsets = [0, 32], sizes = [2, 32], strides = [1, 1]} : vector<2x128xf32> to vector<2x32xf32>
    %60 = arith.negf %59 : vector<2x32xf32>
    %61 = math.exp %60 : vector<2x32xf32>
    %cst_28 = arith.constant 1.000000e+00 : f32
    %62 = vector.broadcast %cst_28 : f32 to vector<2x32xf32>
    %63 = arith.addf %62, %61 : vector<2x32xf32>
    %64 = arith.divf %62, %63 : vector<2x32xf32>
    %65 = vector.extract_strided_slice %51 {offsets = [0, 64], sizes = [2, 32], strides = [1, 1]} : vector<2x128xf32> to vector<2x32xf32>
    %66 = math.tanh %65 : vector<2x32xf32>
    %67 = vector.extract_strided_slice %51 {offsets = [0, 96], sizes = [2, 32], strides = [1, 1]} : vector<2x128xf32> to vector<2x32xf32>
    %68 = arith.negf %67 : vector<2x32xf32>
    %69 = math.exp %68 : vector<2x32xf32>
    %cst_29 = arith.constant 1.000000e+00 : f32
    %70 = vector.broadcast %cst_29 : f32 to vector<2x32xf32>
    %71 = arith.addf %70, %69 : vector<2x32xf32>
    %72 = arith.divf %70, %71 : vector<2x32xf32>
    %73 = arith.mulf %64, %52 : vector<2x32xf32>
    %74 = arith.mulf %58, %66 : vector<2x32xf32>
    %75 = arith.addf %73, %74 : vector<2x32xf32>
    %76 = math.tanh %75 : vector<2x32xf32>
    %77 = arith.mulf %72, %76 : vector<2x32xf32>
    %c0_30 = arith.constant 0 : index
    %c0_31 = arith.constant 0 : index
    %78 = vector.load %arg13[%c0_30, %c0_31] : memref<2x32xf32, #tpu.memory_space<vmem>>, vector<2x32xf32>
    tpu.vector_store %arg13[%c0_30, %c0_31], %77 {strides = array<i32>} : memref<2x32xf32, #tpu.memory_space<vmem>>, vector<2x32xf32>,
    %c0_32 = arith.constant 0 : index
    %c0_33 = arith.constant 0 : index
    %79 = vector.load %arg14[%c0_32, %c0_33] : memref<2x32xf32, #tpu.memory_space<vmem>>, vector<2x32xf32>
    tpu.vector_store %arg14[%c0_32, %c0_33], %75 {strides = array<i32>} : memref<2x32xf32, #tpu.memory_space<vmem>>, vector<2x32xf32>,
    %80 = arith.index_cast %43 : i32 to index
    %c0_34 = arith.constant 0 : index
    %c0_35 = arith.constant 0 : index
    %81 = vector.load %arg9[%80, %c0_34, %c0_35] : memref<4x2x32xf32, #tpu.memory_space<vmem>>, vector<1x2x32xf32>
    %82 = vector.shape_cast %81 : vector<1x2x32xf32> to vector<2x32xf32>
    %83 = vector.shape_cast %77 : vector<2x32xf32> to vector<1x2x32xf32>
    tpu.vector_store %arg9[%80, %c0_34, %c0_35], %83 {strides = array<i32>} : memref<4x2x32xf32, #tpu.memory_space<vmem>>, vector<1x2x32xf32>,
    %c1_i32 = arith.constant 1 : i32
    %84 = arith.index_cast %c1_i32 : i32 to index
    %c0_36 = arith.constant 0 : index
    %c0_37 = arith.constant 0 : index
    %85 = vector.load %arg1[%84, %c0_36, %c0_37] : memref<4x2x128xf32, #tpu.memory_space<vmem>>, vector<1x2x128xf32>
    %86 = vector.shape_cast %85 : vector<1x2x128xf32> to vector<2x128xf32>
    %c0_38 = arith.constant 0 : index
    %c0_39 = arith.constant 0 : index
    %87 = vector.load %arg11[%c0_38, %c0_39] : memref<2x32xf32, #tpu.memory_space<vmem>>, vector<2x32xf32>
    %88 = arith.truncf %87 : vector<2x32xf32> to vector<2x32xbf16>
    %c0_40 = arith.constant 0 : index
    %c0_41 = arith.constant 0 : index
    %89 = vector.load %arg3[%c0_40, %c0_41] : memref<32x128xbf16, #tpu.memory_space<vmem>>, vector<32x128xbf16>
    %cst_42 = arith.constant dense<0.000000e+00> : vector<2x128xf32>
    %90 = tpu.matmul %88, %89, %cst_42 {dimension_numbers = #tpu.dot_dimension_numbers<[1], [0], [0], [1], [0, 0, 1, 1], [], []>} : vector<2x32xbf16>, vector<32x128xbf16>, vector<2x128xf32> -> vector<2x128xf32>
    %91 = arith.addf %86, %90 : vector<2x128xf32>
    %c0_43 = arith.constant 0 : index
    %c0_44 = arith.constant 0 : index
    %92 = vector.load %arg12[%c0_43, %c0_44] : memref<2x32xf32, #tpu.memory_space<vmem>>, vector<2x32xf32>
    %93 = vector.extract_strided_slice %91 {offsets = [0, 0], sizes = [2, 32], strides = [1, 1]} : vector<2x128xf32> to vector<2x32xf32>
    %94 = arith.negf %93 : vector<2x32xf32>
    %95 = math.exp %94 : vector<2x32xf32>
    %cst_45 = arith.constant 1.000000e+00 : f32
    %96 = vector.broadcast %cst_45 : f32 to vector<2x32xf32>
    %97 = arith.addf %96, %95 : vector<2x32xf32>
    %98 = arith.divf %96, %97 : vector<2x32xf32>
    %99 = vector.extract_strided_slice %91 {offsets = [0, 32], sizes = [2, 32], strides = [1, 1]} : vector<2x128xf32> to vector<2x32xf32>
    %100 = arith.negf %99 : vector<2x32xf32>
    %101 = math.exp %100 : vector<2x32xf32>
    %cst_46 = arith.constant 1.000000e+00 : f32
    %102 = vector.broadcast %cst_46 : f32 to vector<2x32xf32>
    %103 = arith.addf %102, %101 : vector<2x32xf32>
    %104 = arith.divf %102, %103 : vector<2x32xf32>
    %105 = vector.extract_strided_slice %91 {offsets = [0, 64], sizes = [2, 32], strides = [1, 1]} : vector<2x128xf32> to vector<2x32xf32>
    %106 = math.tanh %105 : vector<2x32xf32>
    %107 = vector.extract_strided_slice %91 {offsets = [0, 96], sizes = [2, 32], strides = [1, 1]} : vector<2x128xf32> to vector<2x32xf32>
    %108 = arith.negf %107 : vector<2x32xf32>
    %109 = math.exp %108 : vector<2x32xf32>
    %cst_47 = arith.constant 1.000000e+00 : f32
    %110 = vector.broadcast %cst_47 : f32 to vector<2x32xf32>
    %111 = arith.addf %110, %109 : vector<2x32xf32>
    %112 = arith.divf %110, %111 : vector<2x32xf32>
    %113 = arith.mulf %104, %92 : vector<2x32xf32>
    %114 = arith.mulf %98, %106 : vector<2x32xf32>
    %115 = arith.addf %113, %114 : vector<2x32xf32>
    %116 = math.tanh %115 : vector<2x32xf32>
    %117 = arith.mulf %112, %116 : vector<2x32xf32>
    %c0_48 = arith.constant 0 : index
    %c0_49 = arith.constant 0 : index
    %118 = vector.load %arg11[%c0_48, %c0_49] : memref<2x32xf32, #tpu.memory_space<vmem>>, vector<2x32xf32>
    tpu.vector_store %arg11[%c0_48, %c0_49], %117 {strides = array<i32>} : memref<2x32xf32, #tpu.memory_space<vmem>>, vector<2x32xf32>,
    %c0_50 = arith.constant 0 : index
    %c0_51 = arith.constant 0 : index
    %119 = vector.load %arg12[%c0_50, %c0_51] : memref<2x32xf32, #tpu.memory_space<vmem>>, vector<2x32xf32>
    tpu.vector_store %arg12[%c0_50, %c0_51], %115 {strides = array<i32>} : memref<2x32xf32, #tpu.memory_space<vmem>>, vector<2x32xf32>,
    %120 = arith.index_cast %c1_i32 : i32 to index
    %c0_52 = arith.constant 0 : index
    %c0_53 = arith.constant 0 : index
    %121 = vector.load %arg8[%120, %c0_52, %c0_53] : memref<4x2x32xf32, #tpu.memory_space<vmem>>, vector<1x2x32xf32>
    %122 = vector.shape_cast %121 : vector<1x2x32xf32> to vector<2x32xf32>
    %123 = vector.shape_cast %117 : vector<2x32xf32> to vector<1x2x32xf32>
    tpu.vector_store %arg8[%120, %c0_52, %c0_53], %123 {strides = array<i32>} : memref<4x2x32xf32, #tpu.memory_space<vmem>>, vector<1x2x32xf32>,
    %c3_i32_54 = arith.constant 3 : i32
    %124 = arith.subi %c3_i32_54, %c1_i32 : i32
    %125 = arith.index_cast %124 : i32 to index
    %c0_55 = arith.constant 0 : index
    %c0_56 = arith.constant 0 : index
    %126 = vector.load %arg2[%125, %c0_55, %c0_56] : memref<4x2x128xf32, #tpu.memory_space<vmem>>, vector<1x2x128xf32>
    %127 = vector.shape_cast %126 : vector<1x2x128xf32> to vector<2x128xf32>
    %c0_57 = arith.constant 0 : index
    %c0_58 = arith.constant 0 : index
    %128 = vector.load %arg13[%c0_57, %c0_58] : memref<2x32xf32, #tpu.memory_space<vmem>>, vector<2x32xf32>
    %129 = arith.truncf %128 : vector<2x32xf32> to vector<2x32xbf16>
    %c0_59 = arith.constant 0 : index
    %c0_60 = arith.constant 0 : index
    %130 = vector.load %arg4[%c0_59, %c0_60] : memref<32x128xbf16, #tpu.memory_space<vmem>>, vector<32x128xbf16>
    %cst_61 = arith.constant dense<0.000000e+00> : vector<2x128xf32>
    %131 = tpu.matmul %129, %130, %cst_61 {dimension_numbers = #tpu.dot_dimension_numbers<[1], [0], [0], [1], [0, 0, 1, 1], [], []>} : vector<2x32xbf16>, vector<32x128xbf16>, vector<2x128xf32> -> vector<2x128xf32>
    %132 = arith.addf %127, %131 : vector<2x128xf32>
    %c0_62 = arith.constant 0 : index
    %c0_63 = arith.constant 0 : index
    %133 = vector.load %arg14[%c0_62, %c0_63] : memref<2x32xf32, #tpu.memory_space<vmem>>, vector<2x32xf32>
    %134 = vector.extract_strided_slice %132 {offsets = [0, 0], sizes = [2, 32], strides = [1, 1]} : vector<2x128xf32> to vector<2x32xf32>
    %135 = arith.negf %134 : vector<2x32xf32>
    %136 = math.exp %135 : vector<2x32xf32>
    %cst_64 = arith.constant 1.000000e+00 : f32
    %137 = vector.broadcast %cst_64 : f32 to vector<2x32xf32>
    %138 = arith.addf %137, %136 : vector<2x32xf32>
    %139 = arith.divf %137, %138 : vector<2x32xf32>
    %140 = vector.extract_strided_slice %132 {offsets = [0, 32], sizes = [2, 32], strides = [1, 1]} : vector<2x128xf32> to vector<2x32xf32>
    %141 = arith.negf %140 : vector<2x32xf32>
    %142 = math.exp %141 : vector<2x32xf32>
    %cst_65 = arith.constant 1.000000e+00 : f32
    %143 = vector.broadcast %cst_65 : f32 to vector<2x32xf32>
    %144 = arith.addf %143, %142 : vector<2x32xf32>
    %145 = arith.divf %143, %144 : vector<2x32xf32>
    %146 = vector.extract_strided_slice %132 {offsets = [0, 64], sizes = [2, 32], strides = [1, 1]} : vector<2x128xf32> to vector<2x32xf32>
    %147 = math.tanh %146 : vector<2x32xf32>
    %148 = vector.extract_strided_slice %132 {offsets = [0, 96], sizes = [2, 32], strides = [1, 1]} : vector<2x128xf32> to vector<2x32xf32>
    %149 = arith.negf %148 : vector<2x32xf32>
    %150 = math.exp %149 : vector<2x32xf32>
    %cst_66 = arith.constant 1.000000e+00 : f32
    %151 = vector.broadcast %cst_66 : f32 to vector<2x32xf32>
    %152 = arith.addf %151, %150 : vector<2x32xf32>
    %153 = arith.divf %151, %152 : vector<2x32xf32>
    %154 = arith.mulf %145, %133 : vector<2x32xf32>
    %155 = arith.mulf %139, %147 : vector<2x32xf32>
    %156 = arith.addf %154, %155 : vector<2x32xf32>
    %157 = math.tanh %156 : vector<2x32xf32>
    %158 = arith.mulf %153, %157 : vector<2x32xf32>
    %c0_67 = arith.constant 0 : index
    %c0_68 = arith.constant 0 : index
    %159 = vector.load %arg13[%c0_67, %c0_68] : memref<2x32xf32, #tpu.memory_space<vmem>>, vector<2x32xf32>
    tpu.vector_store %arg13[%c0_67, %c0_68], %158 {strides = array<i32>} : memref<2x32xf32, #tpu.memory_space<vmem>>, vector<2x32xf32>,
    %c0_69 = arith.constant 0 : index
    %c0_70 = arith.constant 0 : index
    %160 = vector.load %arg14[%c0_69, %c0_70] : memref<2x32xf32, #tpu.memory_space<vmem>>, vector<2x32xf32>
    tpu.vector_store %arg14[%c0_69, %c0_70], %156 {strides = array<i32>} : memref<2x32xf32, #tpu.memory_space<vmem>>, vector<2x32xf32>,
    %161 = arith.index_cast %124 : i32 to index
    %c0_71 = arith.constant 0 : index
    %c0_72 = arith.constant 0 : index
    %162 = vector.load %arg9[%161, %c0_71, %c0_72] : memref<4x2x32xf32, #tpu.memory_space<vmem>>, vector<1x2x32xf32>
    %163 = vector.shape_cast %162 : vector<1x2x32xf32> to vector<2x32xf32>
    %164 = vector.shape_cast %158 : vector<2x32xf32> to vector<1x2x32xf32>
    tpu.vector_store %arg9[%161, %c0_71, %c0_72], %164 {strides = array<i32>} : memref<4x2x32xf32, #tpu.memory_space<vmem>>, vector<1x2x32xf32>,
    %c2_i32 = arith.constant 2 : i32
    %165 = arith.index_cast %c2_i32 : i32 to index
    %c0_73 = arith.constant 0 : index
    %c0_74 = arith.constant 0 : index
    %166 = vector.load %arg1[%165, %c0_73, %c0_74] : memref<4x2x128xf32, #tpu.memory_space<vmem>>, vector<1x2x128xf32>
    %167 = vector.shape_cast %166 : vector<1x2x128xf32> to vector<2x128xf32>
    %c0_75 = arith.constant 0 : index
    %c0_76 = arith.constant 0 : index
    %168 = vector.load %arg11[%c0_75, %c0_76] : memref<2x32xf32, #tpu.memory_space<vmem>>, vector<2x32xf32>
    %169 = arith.truncf %168 : vector<2x32xf32> to vector<2x32xbf16>
    %c0_77 = arith.constant 0 : index
    %c0_78 = arith.constant 0 : index
    %170 = vector.load %arg3[%c0_77, %c0_78] : memref<32x128xbf16, #tpu.memory_space<vmem>>, vector<32x128xbf16>
    %cst_79 = arith.constant dense<0.000000e+00> : vector<2x128xf32>
    %171 = tpu.matmul %169, %170, %cst_79 {dimension_numbers = #tpu.dot_dimension_numbers<[1], [0], [0], [1], [0, 0, 1, 1], [], []>} : vector<2x32xbf16>, vector<32x128xbf16>, vector<2x128xf32> -> vector<2x128xf32>
    %172 = arith.addf %167, %171 : vector<2x128xf32>
    %c0_80 = arith.constant 0 : index
    %c0_81 = arith.constant 0 : index
    %173 = vector.load %arg12[%c0_80, %c0_81] : memref<2x32xf32, #tpu.memory_space<vmem>>, vector<2x32xf32>
    %174 = vector.extract_strided_slice %172 {offsets = [0, 0], sizes = [2, 32], strides = [1, 1]} : vector<2x128xf32> to vector<2x32xf32>
    %175 = arith.negf %174 : vector<2x32xf32>
    %176 = math.exp %175 : vector<2x32xf32>
    %cst_82 = arith.constant 1.000000e+00 : f32
    %177 = vector.broadcast %cst_82 : f32 to vector<2x32xf32>
    %178 = arith.addf %177, %176 : vector<2x32xf32>
    %179 = arith.divf %177, %178 : vector<2x32xf32>
    %180 = vector.extract_strided_slice %172 {offsets = [0, 32], sizes = [2, 32], strides = [1, 1]} : vector<2x128xf32> to vector<2x32xf32>
    %181 = arith.negf %180 : vector<2x32xf32>
    %182 = math.exp %181 : vector<2x32xf32>
    %cst_83 = arith.constant 1.000000e+00 : f32
    %183 = vector.broadcast %cst_83 : f32 to vector<2x32xf32>
    %184 = arith.addf %183, %182 : vector<2x32xf32>
    %185 = arith.divf %183, %184 : vector<2x32xf32>
    %186 = vector.extract_strided_slice %172 {offsets = [0, 64], sizes = [2, 32], strides = [1, 1]} : vector<2x128xf32> to vector<2x32xf32>
    %187 = math.tanh %186 : vector<2x32xf32>
    %188 = vector.extract_strided_slice %172 {offsets = [0, 96], sizes = [2, 32], strides = [1, 1]} : vector<2x128xf32> to vector<2x32xf32>
    %189 = arith.negf %188 : vector<2x32xf32>
    %190 = math.exp %189 : vector<2x32xf32>
    %cst_84 = arith.constant 1.000000e+00 : f32
    %191 = vector.broadcast %cst_84 : f32 to vector<2x32xf32>
    %192 = arith.addf %191, %190 : vector<2x32xf32>
    %193 = arith.divf %191, %192 : vector<2x32xf32>
    %194 = arith.mulf %185, %173 : vector<2x32xf32>
    %195 = arith.mulf %179, %187 : vector<2x32xf32>
    %196 = arith.addf %194, %195 : vector<2x32xf32>
    %197 = math.tanh %196 : vector<2x32xf32>
    %198 = arith.mulf %193, %197 : vector<2x32xf32>
    %c0_85 = arith.constant 0 : index
    %c0_86 = arith.constant 0 : index
    %199 = vector.load %arg11[%c0_85, %c0_86] : memref<2x32xf32, #tpu.memory_space<vmem>>, vector<2x32xf32>
    tpu.vector_store %arg11[%c0_85, %c0_86], %198 {strides = array<i32>} : memref<2x32xf32, #tpu.memory_space<vmem>>, vector<2x32xf32>,
    %c0_87 = arith.constant 0 : index
    %c0_88 = arith.constant 0 : index
    %200 = vector.load %arg12[%c0_87, %c0_88] : memref<2x32xf32, #tpu.memory_space<vmem>>, vector<2x32xf32>
    tpu.vector_store %arg12[%c0_87, %c0_88], %196 {strides = array<i32>} : memref<2x32xf32, #tpu.memory_space<vmem>>, vector<2x32xf32>,
    %201 = arith.index_cast %c2_i32 : i32 to index
    %c0_89 = arith.constant 0 : index
    %c0_90 = arith.constant 0 : index
    %202 = vector.load %arg8[%201, %c0_89, %c0_90] : memref<4x2x32xf32, #tpu.memory_space<vmem>>, vector<1x2x32xf32>
    %203 = vector.shape_cast %202 : vector<1x2x32xf32> to vector<2x32xf32>
    %204 = vector.shape_cast %198 : vector<2x32xf32> to vector<1x2x32xf32>
    tpu.vector_store %arg8[%201, %c0_89, %c0_90], %204 {strides = array<i32>} : memref<4x2x32xf32, #tpu.memory_space<vmem>>, vector<1x2x32xf32>,
    %c3_i32_91 = arith.constant 3 : i32
    %205 = arith.subi %c3_i32_91, %c2_i32 : i32
    %206 = arith.index_cast %205 : i32 to index
    %c0_92 = arith.constant 0 : index
    %c0_93 = arith.constant 0 : index
    %207 = vector.load %arg2[%206, %c0_92, %c0_93] : memref<4x2x128xf32, #tpu.memory_space<vmem>>, vector<1x2x128xf32>
    %208 = vector.shape_cast %207 : vector<1x2x128xf32> to vector<2x128xf32>
    %c0_94 = arith.constant 0 : index
    %c0_95 = arith.constant 0 : index
    %209 = vector.load %arg13[%c0_94, %c0_95] : memref<2x32xf32, #tpu.memory_space<vmem>>, vector<2x32xf32>
    %210 = arith.truncf %209 : vector<2x32xf32> to vector<2x32xbf16>
    %c0_96 = arith.constant 0 : index
    %c0_97 = arith.constant 0 : index
    %211 = vector.load %arg4[%c0_96, %c0_97] : memref<32x128xbf16, #tpu.memory_space<vmem>>, vector<32x128xbf16>
    %cst_98 = arith.constant dense<0.000000e+00> : vector<2x128xf32>
    %212 = tpu.matmul %210, %211, %cst_98 {dimension_numbers = #tpu.dot_dimension_numbers<[1], [0], [0], [1], [0, 0, 1, 1], [], []>} : vector<2x32xbf16>, vector<32x128xbf16>, vector<2x128xf32> -> vector<2x128xf32>
    %213 = arith.addf %208, %212 : vector<2x128xf32>
    %c0_99 = arith.constant 0 : index
    %c0_100 = arith.constant 0 : index
    %214 = vector.load %arg14[%c0_99, %c0_100] : memref<2x32xf32, #tpu.memory_space<vmem>>, vector<2x32xf32>
    %215 = vector.extract_strided_slice %213 {offsets = [0, 0], sizes = [2, 32], strides = [1, 1]} : vector<2x128xf32> to vector<2x32xf32>
    %216 = arith.negf %215 : vector<2x32xf32>
    %217 = math.exp %216 : vector<2x32xf32>
    %cst_101 = arith.constant 1.000000e+00 : f32
    %218 = vector.broadcast %cst_101 : f32 to vector<2x32xf32>
    %219 = arith.addf %218, %217 : vector<2x32xf32>
    %220 = arith.divf %218, %219 : vector<2x32xf32>
    %221 = vector.extract_strided_slice %213 {offsets = [0, 32], sizes = [2, 32], strides = [1, 1]} : vector<2x128xf32> to vector<2x32xf32>
    %222 = arith.negf %221 : vector<2x32xf32>
    %223 = math.exp %222 : vector<2x32xf32>
    %cst_102 = arith.constant 1.000000e+00 : f32
    %224 = vector.broadcast %cst_102 : f32 to vector<2x32xf32>
    %225 = arith.addf %224, %223 : vector<2x32xf32>
    %226 = arith.divf %224, %225 : vector<2x32xf32>
    %227 = vector.extract_strided_slice %213 {offsets = [0, 64], sizes = [2, 32], strides = [1, 1]} : vector<2x128xf32> to vector<2x32xf32>
    %228 = math.tanh %227 : vector<2x32xf32>
    %229 = vector.extract_strided_slice %213 {offsets = [0, 96], sizes = [2, 32], strides = [1, 1]} : vector<2x128xf32> to vector<2x32xf32>
    %230 = arith.negf %229 : vector<2x32xf32>
    %231 = math.exp %230 : vector<2x32xf32>
    %cst_103 = arith.constant 1.000000e+00 : f32
    %232 = vector.broadcast %cst_103 : f32 to vector<2x32xf32>
    %233 = arith.addf %232, %231 : vector<2x32xf32>
    %234 = arith.divf %232, %233 : vector<2x32xf32>
    %235 = arith.mulf %226, %214 : vector<2x32xf32>
    %236 = arith.mulf %220, %228 : vector<2x32xf32>
    %237 = arith.addf %235, %236 : vector<2x32xf32>
    %238 = math.tanh %237 : vector<2x32xf32>
    %239 = arith.mulf %234, %238 : vector<2x32xf32>
    %c0_104 = arith.constant 0 : index
    %c0_105 = arith.constant 0 : index
    %240 = vector.load %arg13[%c0_104, %c0_105] : memref<2x32xf32, #tpu.memory_space<vmem>>, vector<2x32xf32>
    tpu.vector_store %arg13[%c0_104, %c0_105], %239 {strides = array<i32>} : memref<2x32xf32, #tpu.memory_space<vmem>>, vector<2x32xf32>,
    %c0_106 = arith.constant 0 : index
    %c0_107 = arith.constant 0 : index
    %241 = vector.load %arg14[%c0_106, %c0_107] : memref<2x32xf32, #tpu.memory_space<vmem>>, vector<2x32xf32>
    tpu.vector_store %arg14[%c0_106, %c0_107], %237 {strides = array<i32>} : memref<2x32xf32, #tpu.memory_space<vmem>>, vector<2x32xf32>,
    %242 = arith.index_cast %205 : i32 to index
    %c0_108 = arith.constant 0 : index
    %c0_109 = arith.constant 0 : index
    %243 = vector.load %arg9[%242, %c0_108, %c0_109] : memref<4x2x32xf32, #tpu.memory_space<vmem>>, vector<1x2x32xf32>
    %244 = vector.shape_cast %243 : vector<1x2x32xf32> to vector<2x32xf32>
    %245 = vector.shape_cast %239 : vector<2x32xf32> to vector<1x2x32xf32>
    tpu.vector_store %arg9[%242, %c0_108, %c0_109], %245 {strides = array<i32>} : memref<4x2x32xf32, #tpu.memory_space<vmem>>, vector<1x2x32xf32>,
    %c3_i32_110 = arith.constant 3 : i32
    %246 = arith.index_cast %c3_i32_110 : i32 to index
    %c0_111 = arith.constant 0 : index
    %c0_112 = arith.constant 0 : index
    %247 = vector.load %arg1[%246, %c0_111, %c0_112] : memref<4x2x128xf32, #tpu.memory_space<vmem>>, vector<1x2x128xf32>
    %248 = vector.shape_cast %247 : vector<1x2x128xf32> to vector<2x128xf32>
    %c0_113 = arith.constant 0 : index
    %c0_114 = arith.constant 0 : index
    %249 = vector.load %arg11[%c0_113, %c0_114] : memref<2x32xf32, #tpu.memory_space<vmem>>, vector<2x32xf32>
    %250 = arith.truncf %249 : vector<2x32xf32> to vector<2x32xbf16>
    %c0_115 = arith.constant 0 : index
    %c0_116 = arith.constant 0 : index
    %251 = vector.load %arg3[%c0_115, %c0_116] : memref<32x128xbf16, #tpu.memory_space<vmem>>, vector<32x128xbf16>
    %cst_117 = arith.constant dense<0.000000e+00> : vector<2x128xf32>
    %252 = tpu.matmul %250, %251, %cst_117 {dimension_numbers = #tpu.dot_dimension_numbers<[1], [0], [0], [1], [0, 0, 1, 1], [], []>} : vector<2x32xbf16>, vector<32x128xbf16>, vector<2x128xf32> -> vector<2x128xf32>
    %253 = arith.addf %248, %252 : vector<2x128xf32>
    %c0_118 = arith.constant 0 : index
    %c0_119 = arith.constant 0 : index
    %254 = vector.load %arg12[%c0_118, %c0_119] : memref<2x32xf32, #tpu.memory_space<vmem>>, vector<2x32xf32>
    %255 = vector.extract_strided_slice %253 {offsets = [0, 0], sizes = [2, 32], strides = [1, 1]} : vector<2x128xf32> to vector<2x32xf32>
    %256 = arith.negf %255 : vector<2x32xf32>
    %257 = math.exp %256 : vector<2x32xf32>
    %cst_120 = arith.constant 1.000000e+00 : f32
    %258 = vector.broadcast %cst_120 : f32 to vector<2x32xf32>
    %259 = arith.addf %258, %257 : vector<2x32xf32>
    %260 = arith.divf %258, %259 : vector<2x32xf32>
    %261 = vector.extract_strided_slice %253 {offsets = [0, 32], sizes = [2, 32], strides = [1, 1]} : vector<2x128xf32> to vector<2x32xf32>
    %262 = arith.negf %261 : vector<2x32xf32>
    %263 = math.exp %262 : vector<2x32xf32>
    %cst_121 = arith.constant 1.000000e+00 : f32
    %264 = vector.broadcast %cst_121 : f32 to vector<2x32xf32>
    %265 = arith.addf %264, %263 : vector<2x32xf32>
    %266 = arith.divf %264, %265 : vector<2x32xf32>
    %267 = vector.extract_strided_slice %253 {offsets = [0, 64], sizes = [2, 32], strides = [1, 1]} : vector<2x128xf32> to vector<2x32xf32>
    %268 = math.tanh %267 : vector<2x32xf32>
    %269 = vector.extract_strided_slice %253 {offsets = [0, 96], sizes = [2, 32], strides = [1, 1]} : vector<2x128xf32> to vector<2x32xf32>
    %270 = arith.negf %269 : vector<2x32xf32>
    %271 = math.exp %270 : vector<2x32xf32>
    %cst_122 = arith.constant 1.000000e+00 : f32
    %272 = vector.broadcast %cst_122 : f32 to vector<2x32xf32>
    %273 = arith.addf %272, %271 : vector<2x32xf32>
    %274 = arith.divf %272, %273 : vector<2x32xf32>
    %275 = arith.mulf %266, %254 : vector<2x32xf32>
    %276 = arith.mulf %260, %268 : vector<2x32xf32>
    %277 = arith.addf %275, %276 : vector<2x32xf32>
    %278 = math.tanh %277 : vector<2x32xf32>
    %279 = arith.mulf %274, %278 : vector<2x32xf32>
    %c0_123 = arith.constant 0 : index
    %c0_124 = arith.constant 0 : index
    %280 = vector.load %arg11[%c0_123, %c0_124] : memref<2x32xf32, #tpu.memory_space<vmem>>, vector<2x32xf32>
    tpu.vector_store %arg11[%c0_123, %c0_124], %279 {strides = array<i32>} : memref<2x32xf32, #tpu.memory_space<vmem>>, vector<2x32xf32>,
    %c0_125 = arith.constant 0 : index
    %c0_126 = arith.constant 0 : index
    %281 = vector.load %arg12[%c0_125, %c0_126] : memref<2x32xf32, #tpu.memory_space<vmem>>, vector<2x32xf32>
    tpu.vector_store %arg12[%c0_125, %c0_126], %277 {strides = array<i32>} : memref<2x32xf32, #tpu.memory_space<vmem>>, vector<2x32xf32>,
    %282 = arith.index_cast %c3_i32_110 : i32 to index
    %c0_127 = arith.constant 0 : index
    %c0_128 = arith.constant 0 : index
    %283 = vector.load %arg8[%282, %c0_127, %c0_128] : memref<4x2x32xf32, #tpu.memory_space<vmem>>, vector<1x2x32xf32>
    %284 = vector.shape_cast %283 : vector<1x2x32xf32> to vector<2x32xf32>
    %285 = vector.shape_cast %279 : vector<2x32xf32> to vector<1x2x32xf32>
    tpu.vector_store %arg8[%282, %c0_127, %c0_128], %285 {strides = array<i32>} : memref<4x2x32xf32, #tpu.memory_space<vmem>>, vector<1x2x32xf32>,
    %c3_i32_129 = arith.constant 3 : i32
    %286 = arith.subi %c3_i32_129, %c3_i32_110 : i32
    %287 = arith.index_cast %286 : i32 to index
    %c0_130 = arith.constant 0 : index
    %c0_131 = arith.constant 0 : index
    %288 = vector.load %arg2[%287, %c0_130, %c0_131] : memref<4x2x128xf32, #tpu.memory_space<vmem>>, vector<1x2x128xf32>
    %289 = vector.shape_cast %288 : vector<1x2x128xf32> to vector<2x128xf32>
    %c0_132 = arith.constant 0 : index
    %c0_133 = arith.constant 0 : index
    %290 = vector.load %arg13[%c0_132, %c0_133] : memref<2x32xf32, #tpu.memory_space<vmem>>, vector<2x32xf32>
    %291 = arith.truncf %290 : vector<2x32xf32> to vector<2x32xbf16>
    %c0_134 = arith.constant 0 : index
    %c0_135 = arith.constant 0 : index
    %292 = vector.load %arg4[%c0_134, %c0_135] : memref<32x128xbf16, #tpu.memory_space<vmem>>, vector<32x128xbf16>
    %cst_136 = arith.constant dense<0.000000e+00> : vector<2x128xf32>
    %293 = tpu.matmul %291, %292, %cst_136 {dimension_numbers = #tpu.dot_dimension_numbers<[1], [0], [0], [1], [0, 0, 1, 1], [], []>} : vector<2x32xbf16>, vector<32x128xbf16>, vector<2x128xf32> -> vector<2x128xf32>
    %294 = arith.addf %289, %293 : vector<2x128xf32>
    %c0_137 = arith.constant 0 : index
    %c0_138 = arith.constant 0 : index
    %295 = vector.load %arg14[%c0_137, %c0_138] : memref<2x32xf32, #tpu.memory_space<vmem>>, vector<2x32xf32>
    %296 = vector.extract_strided_slice %294 {offsets = [0, 0], sizes = [2, 32], strides = [1, 1]} : vector<2x128xf32> to vector<2x32xf32>
    %297 = arith.negf %296 : vector<2x32xf32>
    %298 = math.exp %297 : vector<2x32xf32>
    %cst_139 = arith.constant 1.000000e+00 : f32
    %299 = vector.broadcast %cst_139 : f32 to vector<2x32xf32>
    %300 = arith.addf %299, %298 : vector<2x32xf32>
    %301 = arith.divf %299, %300 : vector<2x32xf32>
    %302 = vector.extract_strided_slice %294 {offsets = [0, 32], sizes = [2, 32], strides = [1, 1]} : vector<2x128xf32> to vector<2x32xf32>
    %303 = arith.negf %302 : vector<2x32xf32>
    %304 = math.exp %303 : vector<2x32xf32>
    %cst_140 = arith.constant 1.000000e+00 : f32
    %305 = vector.broadcast %cst_140 : f32 to vector<2x32xf32>
    %306 = arith.addf %305, %304 : vector<2x32xf32>
    %307 = arith.divf %305, %306 : vector<2x32xf32>
    %308 = vector.extract_strided_slice %294 {offsets = [0, 64], sizes = [2, 32], strides = [1, 1]} : vector<2x128xf32> to vector<2x32xf32>
    %309 = math.tanh %308 : vector<2x32xf32>
    %310 = vector.extract_strided_slice %294 {offsets = [0, 96], sizes = [2, 32], strides = [1, 1]} : vector<2x128xf32> to vector<2x32xf32>
    %311 = arith.negf %310 : vector<2x32xf32>
    %312 = math.exp %311 : vector<2x32xf32>
    %cst_141 = arith.constant 1.000000e+00 : f32
    %313 = vector.broadcast %cst_141 : f32 to vector<2x32xf32>
    %314 = arith.addf %313, %312 : vector<2x32xf32>
    %315 = arith.divf %313, %314 : vector<2x32xf32>
    %316 = arith.mulf %307, %295 : vector<2x32xf32>
    %317 = arith.mulf %301, %309 : vector<2x32xf32>
    %318 = arith.addf %316, %317 : vector<2x32xf32>
    %319 = math.tanh %318 : vector<2x32xf32>
    %320 = arith.mulf %315, %319 : vector<2x32xf32>
    %c0_142 = arith.constant 0 : index
    %c0_143 = arith.constant 0 : index
    %321 = vector.load %arg13[%c0_142, %c0_143] : memref<2x32xf32, #tpu.memory_space<vmem>>, vector<2x32xf32>
    tpu.vector_store %arg13[%c0_142, %c0_143], %320 {strides = array<i32>} : memref<2x32xf32, #tpu.memory_space<vmem>>, vector<2x32xf32>,
    %c0_144 = arith.constant 0 : index
    %c0_145 = arith.constant 0 : index
    %322 = vector.load %arg14[%c0_144, %c0_145] : memref<2x32xf32, #tpu.memory_space<vmem>>, vector<2x32xf32>
    tpu.vector_store %arg14[%c0_144, %c0_145], %318 {strides = array<i32>} : memref<2x32xf32, #tpu.memory_space<vmem>>, vector<2x32xf32>,
    %323 = arith.index_cast %286 : i32 to index
    %c0_146 = arith.constant 0 : index
    %c0_147 = arith.constant 0 : index
    %324 = vector.load %arg9[%323, %c0_146, %c0_147] : memref<4x2x32xf32, #tpu.memory_space<vmem>>, vector<1x2x32xf32>
    %325 = vector.shape_cast %324 : vector<1x2x32xf32> to vector<2x32xf32>
    %326 = vector.shape_cast %320 : vector<2x32xf32> to vector<1x2x32xf32>
    tpu.vector_store %arg9[%323, %c0_146, %c0_147], %326 {strides = array<i32>} : memref<4x2x32xf32, #tpu.memory_space<vmem>>, vector<1x2x32xf32>,
    %c4_i32 = arith.constant 4 : i32
    %c1_i32_148 = arith.constant 1 : i32
    %327 = arith.cmpi eq, %arg0, %c1_i32_148 : i32
    %328 = arith.extui %327 : i1 to i32
    %c0_i32_149 = arith.constant 0 : i32
    %329 = arith.cmpi ne, %328, %c0_i32_149 : i32
    scf.if %329 {
      %c0_150 = arith.constant 0 : index
      %c0_151 = arith.constant 0 : index
      %330 = vector.load %arg11[%c0_150, %c0_151] : memref<2x32xf32, #tpu.memory_space<vmem>>, vector<2x32xf32>
      %331 = arith.truncf %330 : vector<2x32xf32> to vector<2x32xbf16>
      %c0_152 = arith.constant 0 : index
      %c0_153 = arith.constant 0 : index
      %332 = vector.load %arg5[%c0_152, %c0_153] : memref<32x128xbf16, #tpu.memory_space<vmem>>, vector<32x128xbf16>
      %cst_154 = arith.constant dense<0.000000e+00> : vector<2x128xf32>
      %333 = tpu.matmul %331, %332, %cst_154 {dimension_numbers = #tpu.dot_dimension_numbers<[1], [0], [0], [1], [0, 0, 1, 1], [], []>} : vector<2x32xbf16>, vector<32x128xbf16>, vector<2x128xf32> -> vector<2x128xf32>
      %c0_155 = arith.constant 0 : index
      %c0_156 = arith.constant 0 : index
      %334 = vector.load %arg13[%c0_155, %c0_156] : memref<2x32xf32, #tpu.memory_space<vmem>>, vector<2x32xf32>
      %335 = arith.truncf %334 : vector<2x32xf32> to vector<2x32xbf16>
      %c0_157 = arith.constant 0 : index
      %c0_158 = arith.constant 0 : index
      %336 = vector.load %arg6[%c0_157, %c0_158] : memref<32x128xbf16, #tpu.memory_space<vmem>>, vector<32x128xbf16>
      %cst_159 = arith.constant dense<0.000000e+00> : vector<2x128xf32>
      %337 = tpu.matmul %335, %336, %cst_159 {dimension_numbers = #tpu.dot_dimension_numbers<[1], [0], [0], [1], [0, 0, 1, 1], [], []>} : vector<2x32xbf16>, vector<32x128xbf16>, vector<2x128xf32> -> vector<2x128xf32>
      %338 = arith.addf %333, %337 : vector<2x128xf32>
      %c0_160 = arith.constant 0 : index
      %c0_161 = arith.constant 0 : index
      %339 = vector.load %arg7[%c0_160, %c0_161] : memref<1x128xf32, #tpu.memory_space<vmem>>, vector<1x128xf32>
      %340 = vector.broadcast %339 : vector<1x128xf32> to vector<2x128xf32>
      %341 = arith.addf %338, %340 : vector<2x128xf32>
      %c0_162 = arith.constant 0 : index
      %c0_163 = arith.constant 0 : index
      %342 = vector.load %arg10[%c0_162, %c0_163] : memref<2x128xf32, #tpu.memory_space<vmem>>, vector<2x128xf32>
      tpu.vector_store %arg10[%c0_162, %c0_163], %341 {strides = array<i32>} : memref<2x128xf32, #tpu.memory_space<vmem>>, vector<2x128xf32>,
    } else {
    }
    return
  }
  func.func @transform_0(%arg0: i32) -> (i32, i32, i32) {
    %c0_i32 = arith.constant 0 : i32
    %c0_i32_0 = arith.constant 0 : i32
    %c0_i32_1 = arith.constant 0 : i32
    return %arg0, %c0_i32, %c0_i32_0 : i32, i32, i32
  }
  func.func @transform_1(%arg0: i32) -> (i32, i32, i32) {
    %c1_i32 = arith.constant 1 : i32
    %0 = arith.subi %c1_i32, %arg0 : i32
    %c0_i32 = arith.constant 0 : i32
    %c0_i32_0 = arith.constant 0 : i32
    %c0_i32_1 = arith.constant 0 : i32
    return %0, %c0_i32, %c0_i32_0 : i32, i32, i32
  }
  func.func @transform_2(%arg0: i32) -> (i32, i32) {
    %c0_i32 = arith.constant 0 : i32
    %c0_i32_0 = arith.constant 0 : i32
    %c0_i32_1 = arith.constant 0 : i32
    return %c0_i32, %c0_i32_0 : i32, i32
  }
  func.func @transform_3(%arg0: i32) -> (i32, i32) {
    %c0_i32 = arith.constant 0 : i32
    %c0_i32_0 = arith.constant 0 : i32
    %c0_i32_1 = arith.constant 0 : i32
    return %c0_i32, %c0_i32_0 : i32, i32
  }
  func.func @transform_4(%arg0: i32) -> (i32, i32) {
    %c0_i32 = arith.constant 0 : i32
    %c0_i32_0 = arith.constant 0 : i32
    %c0_i32_1 = arith.constant 0 : i32
    return %c0_i32, %c0_i32_0 : i32, i32
  }
  func.func @transform_5(%arg0: i32) -> (i32, i32) {
    %c0_i32 = arith.constant 0 : i32
    %c0_i32_0 = arith.constant 0 : i32
    %c0_i32_1 = arith.constant 0 : i32
    return %c0_i32, %c0_i32_0 : i32, i32
  }
  func.func @transform_6(%arg0: i32) -> (i32, i32) {
    %c0_i32 = arith.constant 0 : i32
    %c0_i32_0 = arith.constant 0 : i32
    %c0_i32_1 = arith.constant 0 : i32
    return %c0_i32, %c0_i32_0 : i32, i32
  }
  func.func @transform_7(%arg0: i32) -> (i32, i32, i32) {
    %c0_i32 = arith.constant 0 : i32
    %c0_i32_0 = arith.constant 0 : i32
    %c0_i32_1 = arith.constant 0 : i32
    return %arg0, %c0_i32, %c0_i32_0 : i32, i32, i32
  }
  func.func @transform_8(%arg0: i32) -> (i32, i32, i32) {
    %c1_i32 = arith.constant 1 : i32
    %0 = arith.subi %c1_i32, %arg0 : i32
    %c0_i32 = arith.constant 0 : i32
    %c0_i32_0 = arith.constant 0 : i32
    %c0_i32_1 = arith.constant 0 : i32
    return %0, %c0_i32, %c0_i32_0 : i32, i32, i32
  }
  func.func @transform_9(%arg0: i32) -> (i32, i32) {
    %c0_i32 = arith.constant 0 : i32
    %c0_i32_0 = arith.constant 0 : i32
    %c0_i32_1 = arith.constant 0 : i32
    return %c0_i32, %c0_i32_0 : i32, i32
  }
}

</mosaic_0001>

<llo_original>
// kernel: tpu_custom_call.1
$region0: #{tpu_custom_call.1}
  #allocation0 [shape = 'u32[]', space=smem, size = 0x4, offset = 0x4, fixed_abs, tag = 'smem constant byte address 0x4 - core index']
  #allocation1 [shape = 'u32[144,128]{1,0:T(1,128)}', space=vmem, size = 0x12000, scoped, tag = 'internal scratch']
  #allocation2 [shape = 'f32[2,32]{1,0:T(2,128)}', space=vmem, size = 0x400, scoped, tag = 'scratch operand']
  #allocation3 [shape = 'f32[2,32]{1,0:T(2,128)}', space=vmem, size = 0x400, scoped, tag = 'scratch operand']
  #allocation4 [shape = 'f32[2,32]{1,0:T(2,128)}', space=vmem, size = 0x400, scoped, tag = 'scratch operand']
  #allocation5 [shape = 'f32[2,32]{1,0:T(2,128)}', space=vmem, size = 0x400, scoped, tag = 'scratch operand']
  %s0 = inlined_call_operand.hbm [shape: f32[8,2,128], index: 0, kind: input, shape index: {}]
  %s1 = inlined_call_operand.hbm [shape: f32[8,2,128], index: 1, kind: input, shape index: {}]
  %s2 = inlined_call_operand.hbm [shape: bf16[32,128], index: 2, kind: input, shape index: {}]
  %s3 = inlined_call_operand.hbm [shape: bf16[32,128], index: 3, kind: input, shape index: {}]
  %s4 = inlined_call_operand.hbm [shape: bf16[32,128], index: 4, kind: input, shape index: {}]
  %s5 = inlined_call_operand.vmem [shape: bf16[32,128], index: 5, kind: input, shape index: {}]
  %s6 = inlined_call_operand.vmem [shape: f32[1,128], index: 6, kind: input, shape index: {}]
  %s7 = inlined_call_operand.hbm [shape: f32[8,2,32], index: 7, kind: output, shape index: {0}]
  %s8 = inlined_call_operand.hbm [shape: f32[8,2,32], index: 8, kind: output, shape index: {1}]
  %s9 = inlined_call_operand.hbm [shape: f32[2,128], index: 9, kind: output, shape index: {2}]
  %10 = xla_tuple %s7, %s8, %s9
  %s11 = sld [smem:[#allocation0]]
  $region105: #{tpu_custom_call.1} parent=0
    _
  %s13 = ssub.s32 1, %s11
  %s14 = scalar_select 0, %s13, %s11
  $region1: #{tpu_custom_call.1} parent=0
    #allocation6 [shape = 'u8[8192]{0}', space=vmem, size = 0x2000, scoped, tag = 'input window, operand 0']
    #allocation7 [shape = 's32[2]{0}', space=sflag, size = 0x8, scoped, tag = 'scoped memory for tpu_custom_call.1']
    #allocation8 [shape = 's32[2]{0}', space=sflag, size = 0x8, scoped, tag = 'scoped memory for tpu_custom_call.1']
    #allocation9 [shape = 'u8[8192]{0}', space=vmem, size = 0x2000, scoped, tag = 'input window, operand 1']
    #allocation10 [shape = 's32[2]{0}', space=sflag, size = 0x8, scoped, tag = 'scoped memory for tpu_custom_call.1']
    #allocation11 [shape = 'u8[8192]{0}', space=vmem, size = 0x2000, scoped, tag = 'input window, operand 2, single buffered']
    #allocation12 [shape = 'u8[8192]{0}', space=vmem, size = 0x2000, scoped, tag = 'input window, operand 3, single buffered']
    #allocation13 [shape = 's32[1]{0}', space=sflag, size = 0x4, scoped, tag = 'scoped memory for tpu_custom_call.1']
    #allocation14 [shape = 'u8[8192]{0}', space=vmem, size = 0x2000, scoped, tag = 'input window, operand 4, single buffered']
    #allocation15 [shape = 'u8[8192]{0}', space=vmem, size = 0x2000, scoped, tag = 'output window, operand 0']
    #allocation16 [shape = 'u8[8192]{0}', space=vmem, size = 0x2000, scoped, tag = 'output window, operand 1']
    #allocation17 [shape = 's32[2]{0}', space=sflag, size = 0x8, scoped, tag = 'scoped memory for tpu_custom_call.1']
    #allocation18 [shape = 'u8[1024]{0}', space=vmem, size = 0x400, scoped, tag = 'output window, operand 2, single buffered']
    %15 = vsyncpa [#allocation7], 0
    %s16 = scalar_lea.sflag [#allocation7], 1
    %17 = vsyncpa %s16, 0
    %18 = vsyncpa [#allocation10], 0
    %s19 = scalar_lea.sflag [#allocation10], 1
    %20 = vsyncpa %s19, 0
    %21 = vsyncpa [#allocation13], 0
    %22 = vsyncpa [#allocation8], 0
    %s23 = scalar_lea.sflag [#allocation8], 1
    %24 = vsyncpa %s23, 0
    %25 = vsyncpa [#allocation17], 0
    %s26 = scalar_lea.sflag [#allocation17], 1
    %27 = vsyncpa %s26, 0
    loop: start=0, step=1, limit=4
    $region2: #{tpu_custom_call.1} parent=1 // loop_pre_header
      _
    $region3: #{tpu_custom_call.1} parent=1 // loop_header
      %s29 = sphi 0, %s33
      %p30 = scmp.ge.s32.totalorder %s29, 4
      %s39 = sphi 0, %s41
      %s42 = sphi 0, %s39
      %s43 = sphi 0, %s42
      %s59 = sphi 0, %s43
      %s67 = sphi 0, %s69
      %s70 = sphi 0, %s67
      %s71 = sphi 0, %s70
      %s87 = sphi 0, %s71
      %s91 = sphi 0, %s91
      %s93 = sphi 0, %s91
      %s94 = sphi 0, %s93
      %s108 = sphi 0, %s94
      %s112 = sphi 0, %s112
      %s114 = sphi 0, %s112
      %s115 = sphi 0, %s114
      %s129 = sphi 0, %s115
      %s133 = sphi 0, %s133
      %s135 = sphi 0, %s133
      %s136 = sphi 0, %s135
      %s150 = sphi 0, %s136
      %s154 = sphi 0, %s154
      %s156 = sphi 0, %s154
      %s157 = sphi 0, %s156
      %s171 = sphi 0, %s157
      %s175 = sphi 0, %s175
      %s177 = sphi 0, %s175
      %s178 = sphi 0, %s177
      %s192 = sphi 0, %s178
      %s198 = sphi 0, %s200
      %s201 = sphi 0, %s198
      %s202 = sphi 0, %s201
      %s218 = sphi 0, %s202
      %s226 = sphi 0, %s228
      %s229 = sphi 0, %s226
      %s230 = sphi 0, %s229
      %s246 = sphi 0, %s230
      %s250 = sphi 0, %s250
      %s252 = sphi 0, %s250
      %s253 = sphi 0, %s252
      %s267 = sphi 0, %s253
    $region4: #{tpu_custom_call.1} parent=1 // loop_header_branch
      %32 = sbr.rel (%p30) target = $region8
    $region5: #{tpu_custom_call.1} parent=1 // loop_body
      %s34 = ssub.s32 %s29, 1
      %s35 = ssub.s32 %s29, 2
      %s36 = sadd.s32 %s29, 1
      %s37 = ssub.s32 %s29, %s36
      %p38 = scmp.eq.s32.totalorder %s37, 0
      %s40 = sadd.s32 %s39, 1
      %s41 = scalar_select %p38, %s39, %s40
      %p44 = pneg %p38
      %p45 = scmp.eq.s32.totalorder %s29, 1
      %p46 = por %p44, %p45
      %p47 = scmp.ne.s32.totalorder %s39, %s42
      %p48 = scmp.eq.s32.totalorder %s29, 0
      %p49 = por %p47, %p48
      %p50 = scmp.ne.s32.totalorder %s39, %s42
      %p51 = scmp.eq.s32.totalorder %s34, 1
      %p52 = por %p50, %p51
      %p53 = scmp.ne.s32.totalorder %s42, %s43
      %p54 = scmp.eq.s32.totalorder %s34, 0
      %p55 = por %p53, %p54
      %p56 = scmp.ne.s32.totalorder %s42, %s43
      %p57 = scmp.eq.s32.totalorder %s35, 1
      %p58 = por %p56, %p57
      %p60 = scmp.ne.s32.totalorder %s43, %s59
      %p61 = scmp.eq.s32.totalorder %s35, 0
      %p62 = por %p60, %p61
      %s63 = ssub.s32 1, %s29
      %s64 = ssub.s32 1, %s36
      %s65 = ssub.s32 %s63, %s64
      %p66 = scmp.eq.s32.totalorder %s65, 0
      %s68 = sadd.s32 %s67, 1
      %s69 = scalar_select %p66, %s67, %s68
      %p72 = pneg %p66
      %p73 = scmp.eq.s32.totalorder %s29, 1
      %p74 = por %p72, %p73
      %p75 = scmp.ne.s32.totalorder %s67, %s70
      %p76 = scmp.eq.s32.totalorder %s29, 0
      %p77 = por %p75, %p76
      %p78 = scmp.ne.s32.totalorder %s67, %s70
      %p79 = scmp.eq.s32.totalorder %s34, 1
      %p80 = por %p78, %p79
      %p81 = scmp.ne.s32.totalorder %s70, %s71
      %p82 = scmp.eq.s32.totalorder %s34, 0
      %p83 = por %p81, %p82
      %p84 = scmp.ne.s32.totalorder %s70, %s71
      %p85 = scmp.eq.s32.totalorder %s35, 1
      %p86 = por %p84, %p85
      %p88 = scmp.ne.s32.totalorder %s71, %s87
      %p89 = scmp.eq.s32.totalorder %s35, 0
      %p90 = por %p88, %p89
      %s92 = sadd.s32 %s91, 1
      %p95 = scmp.eq.s32.totalorder %s29, 1
      %p96 = scmp.ne.s32.totalorder %s91, %s93
      %p97 = scmp.eq.s32.totalorder %s29, 0
      %p98 = por %p96, %p97
      %p99 = scmp.ne.s32.totalorder %s91, %s93
      %p100 = scmp.eq.s32.totalorder %s34, 1
      %p101 = por %p99, %p100
      %p102 = scmp.ne.s32.totalorder %s93, %s94
      %p103 = scmp.eq.s32.totalorder %s34, 0
      %p104 = por %p102, %p103
      %p105 = scmp.ne.s32.totalorder %s93, %s94
      %p106 = scmp.eq.s32.totalorder %s35, 1
      %p107 = por %p105, %p106
      %p109 = scmp.ne.s32.totalorder %s94, %s108
      %p110 = scmp.eq.s32.totalorder %s35, 0
      %p111 = por %p109, %p110
      %s113 = sadd.s32 %s112, 1
      %p116 = scmp.eq.s32.totalorder %s29, 1
      %p117 = scmp.ne.s32.totalorder %s112, %s114
      %p118 = scmp.eq.s32.totalorder %s29, 0
      %p119 = por %p117, %p118
      %p120 = scmp.ne.s32.totalorder %s112, %s114
      %p121 = scmp.eq.s32.totalorder %s34, 1
      %p122 = por %p120, %p121
      %p123 = scmp.ne.s32.totalorder %s114, %s115
      %p124 = scmp.eq.s32.totalorder %s34, 0
      %p125 = por %p123, %p124
      %p126 = scmp.ne.s32.totalorder %s114, %s115
      %p127 = scmp.eq.s32.totalorder %s35, 1
      %p128 = por %p126, %p127
      %p130 = scmp.ne.s32.totalorder %s115, %s129
      %p131 = scmp.eq.s32.totalorder %s35, 0
      %p132 = por %p130, %p131
      %s134 = sadd.s32 %s133, 1
      %p137 = scmp.eq.s32.totalorder %s29, 1
      %p138 = scmp.ne.s32.totalorder %s133, %s135
      %p139 = scmp.eq.s32.totalorder %s29, 0
      %p140 = por %p138, %p139
      %p141 = scmp.ne.s32.totalorder %s133, %s135
      %p142 = scmp.eq.s32.totalorder %s34, 1
      %p143 = por %p141, %p142
      %p144 = scmp.ne.s32.totalorder %s135, %s136
      %p145 = scmp.eq.s32.totalorder %s34, 0
      %p146 = por %p144, %p145
      %p147 = scmp.ne.s32.totalorder %s135, %s136
      %p148 = scmp.eq.s32.totalorder %s35, 1
      %p149 = por %p147, %p148
      %p151 = scmp.ne.s32.totalorder %s136, %s150
      %p152 = scmp.eq.s32.totalorder %s35, 0
      %p153 = por %p151, %p152
      %s155 = sadd.s32 %s154, 1
      %p158 = scmp.eq.s32.totalorder %s29, 1
      %p159 = scmp.ne.s32.totalorder %s154, %s156
      %p160 = scmp.eq.s32.totalorder %s29, 0
      %p161 = por %p159, %p160
      %p162 = scmp.ne.s32.totalorder %s154, %s156
      %p163 = scmp.eq.s32.totalorder %s34, 1
      %p164 = por %p162, %p163
      %p165 = scmp.ne.s32.totalorder %s156, %s157
      %p166 = scmp.eq.s32.totalorder %s34, 0
      %p167 = por %p165, %p166
      %p168 = scmp.ne.s32.totalorder %s156, %s157
      %p169 = scmp.eq.s32.totalorder %s35, 1
      %p170 = por %p168, %p169
      %p172 = scmp.ne.s32.totalorder %s157, %s171
      %p173 = scmp.eq.s32.totalorder %s35, 0
      %p174 = por %p172, %p173
      %s176 = sadd.s32 %s175, 1
      %p179 = scmp.eq.s32.totalorder %s29, 1
      %p180 = scmp.ne.s32.totalorder %s175, %s177
      %p181 = scmp.eq.s32.totalorder %s29, 0
      %p182 = por %p180, %p181
      %p183 = scmp.ne.s32.totalorder %s175, %s177
      %p184 = scmp.eq.s32.totalorder %s34, 1
      %p185 = por %p183, %p184
      %p186 = scmp.ne.s32.totalorder %s177, %s178
      %p187 = scmp.eq.s32.totalorder %s34, 0
      %p188 = por %p186, %p187
      %p189 = scmp.ne.s32.totalorder %s177, %s178
      %p190 = scmp.eq.s32.totalorder %s35, 1
      %p191 = por %p189, %p190
      %p193 = scmp.ne.s32.totalorder %s178, %s192
      %p194 = scmp.eq.s32.totalorder %s35, 0
      %p195 = por %p193, %p194
      %s196 = ssub.s32 %s29, %s36
      %p197 = scmp.eq.s32.totalorder %s196, 0
      %s199 = sadd.s32 %s198, 1
      %s200 = scalar_select %p197, %s198, %s199
      %p203 = pneg %p197
      %p204 = scmp.eq.s32.totalorder %s29, 1
      %p205 = por %p203, %p204
      %p206 = scmp.ne.s32.totalorder %s198, %s201
      %p207 = scmp.eq.s32.totalorder %s29, 0
      %p208 = por %p206, %p207
      %p209 = scmp.ne.s32.totalorder %s198, %s201
      %p210 = scmp.eq.s32.totalorder %s34, 1
      %p211 = por %p209, %p210
      %p212 = scmp.ne.s32.totalorder %s201, %s202
      %p213 = scmp.eq.s32.totalorder %s34, 0
      %p214 = por %p212, %p213
      %p215 = scmp.ne.s32.totalorder %s201, %s202
      %p216 = scmp.eq.s32.totalorder %s35, 1
      %p217 = por %p215, %p216
      %p219 = scmp.ne.s32.totalorder %s202, %s218
      %p220 = scmp.eq.s32.totalorder %s35, 0
      %p221 = por %p219, %p220
      %s222 = ssub.s32 1, %s29
      %s223 = ssub.s32 1, %s36
      %s224 = ssub.s32 %s222, %s223
      %p225 = scmp.eq.s32.totalorder %s224, 0
      %s227 = sadd.s32 %s226, 1
      %s228 = scalar_select %p225, %s226, %s227
      %p231 = pneg %p225
      %p232 = scmp.eq.s32.totalorder %s29, 1
      %p233 = por %p231, %p232
      %p234 = scmp.ne.s32.totalorder %s226, %s229
      %p235 = scmp.eq.s32.totalorder %s29, 0
      %p236 = por %p234, %p235
      %p237 = scmp.ne.s32.totalorder %s226, %s229
      %p238 = scmp.eq.s32.totalorder %s34, 1
      %p239 = por %p237, %p238
      %p240 = scmp.ne.s32.totalorder %s229, %s230
      %p241 = scmp.eq.s32.totalorder %s34, 0
      %p242 = por %p240, %p241
      %p243 = scmp.ne.s32.totalorder %s229, %s230
      %p244 = scmp.eq.s32.totalorder %s35, 1
      %p245 = por %p243, %p244
      %p247 = scmp.ne.s32.totalorder %s230, %s246
      %p248 = scmp.eq.s32.totalorder %s35, 0
      %p249 = por %p247, %p248
      %s251 = sadd.s32 %s250, 1
      %p254 = scmp.eq.s32.totalorder %s29, 1
      %p255 = scmp.ne.s32.totalorder %s250, %s252
      %p256 = scmp.eq.s32.totalorder %s29, 0
      %p257 = por %p255, %p256
      %p258 = scmp.ne.s32.totalorder %s250, %s252
      %p259 = scmp.eq.s32.totalorder %s34, 1
      %p260 = por %p258, %p259
      %p261 = scmp.ne.s32.totalorder %s252, %s253
      %p262 = scmp.eq.s32.totalorder %s34, 0
      %p263 = por %p261, %p262
      %p264 = scmp.ne.s32.totalorder %s252, %s253
      %p265 = scmp.eq.s32.totalorder %s35, 1
      %p266 = por %p264, %p265
      %p268 = scmp.ne.s32.totalorder %s253, %s267
      %p269 = scmp.eq.s32.totalorder %s35, 0
      %p270 = por %p268, %p269
      %p271 = scmp.le.s32.totalorder 1, %s29
      %p272 = scmp.lt.s32.totalorder %s29, 3
      %p273 = pnand %p271, %p272
      %p274 = pneg %p273
      // Predicated region
      $region9: #{tpu_custom_call.1} parent=5 // pred_check
        _
      $region10: #{tpu_custom_call.1} parent=5 // pred_check_branch
        %276 = sbr.rel (%p273) target = $region12
      $region11: #{tpu_custom_call.1} parent=5 // pred_region
        %s277 = ssub.s32 %s29, 1
        // Predicated region
        $region13: #{tpu_custom_call.1} parent=11 // pred_check
          %p278 = pneg %p104
        $region14: #{tpu_custom_call.1} parent=11 // pred_check_branch
          %280 = sbr.rel (%p278) target = $region16
        $region15: #{tpu_custom_call.1} parent=11 // pred_region
          %s282 = ssub.s32 256, 256
          %283 = vsyncadd [#allocation10], %s282
          %s284 = sshll.u32 [#allocation11], 4
          %s285 = int_to_ptr.vmem [resolvable:$true] %s284
          %290 = dma.hbm_to_vmem [thread:$0]  %s2, 256, %s285, [#allocation10], 64, 64, 4
        $region16: #{tpu_custom_call.1} parent=11 // pred_fallthru
          _
        // Predicated region
        $region17: #{tpu_custom_call.1} parent=11 // pred_check
          %p291 = pneg %p125
        $region18: #{tpu_custom_call.1} parent=11 // pred_check_branch
          %293 = sbr.rel (%p291) target = $region20
        $region19: #{tpu_custom_call.1} parent=11 // pred_region
          %s295 = ssub.s32 256, 256
          %296 = vsyncadd [#allocation13], %s295
          %s297 = sshll.u32 [#allocation12], 4
          %s298 = int_to_ptr.vmem [resolvable:$true] %s297
          %303 = dma.hbm_to_vmem [thread:$0]  %s3, 256, %s298, [#allocation13], 64, 64, 4
        $region20: #{tpu_custom_call.1} parent=11 // pred_fallthru
          _
        // Predicated region
        $region21: #{tpu_custom_call.1} parent=11 // pred_check
          %p304 = pneg %p146
        $region22: #{tpu_custom_call.1} parent=11 // pred_check_branch
          %306 = sbr.rel (%p304) target = $region24
        $region23: #{tpu_custom_call.1} parent=11 // pred_region
          %s308 = ssub.s32 256, 256
          %309 = vsyncadd [#allocation13], %s308
          %s310 = sshll.u32 [#allocation14], 4
          %s311 = int_to_ptr.vmem [resolvable:$true] %s310
          %316 = dma.hbm_to_vmem [thread:$0]  %s4, 256, %s311, [#allocation13], 64, 64, 4
        $region24: #{tpu_custom_call.1} parent=11 // pred_fallthru
          _
        // Predicated region
        $region25: #{tpu_custom_call.1} parent=11 // pred_check
          %p317 = pneg %p167
        $region26: #{tpu_custom_call.1} parent=11 // pred_check_branch
          %319 = sbr.rel (%p317) target = $region28
        $region27: #{tpu_custom_call.1} parent=11 // pred_region
          _
        $region28: #{tpu_custom_call.1} parent=11 // pred_fallthru
          _
        // Predicated region
        $region29: #{tpu_custom_call.1} parent=11 // pred_check
          %p320 = pneg %p188
        $region30: #{tpu_custom_call.1} parent=11 // pred_check_branch
          %322 = sbr.rel (%p320) target = $region32
        $region31: #{tpu_custom_call.1} parent=11 // pred_region
          _
        $region32: #{tpu_custom_call.1} parent=11 // pred_fallthru
          _
      $region12: #{tpu_custom_call.1} parent=5 // pred_fallthru
        _
      %p323 = scmp.lt.s32.totalorder %s29, 2
      // Predicated region
      $region33: #{tpu_custom_call.1} parent=5 // pred_check
        %p324 = pneg %p323
      $region34: #{tpu_custom_call.1} parent=5 // pred_check_branch
        %326 = sbr.rel (%p324) target = $region36
      $region35: #{tpu_custom_call.1} parent=5 // pred_region
        // Predicated region
        $region37: #{tpu_custom_call.1} parent=35 // pred_check
          %p327 = pneg %p49
        $region38: #{tpu_custom_call.1} parent=35 // pred_check_branch
          %329 = sbr.rel (%p327) target = $region40
        $region39: #{tpu_custom_call.1} parent=35 // pred_region
          %s330 = sand.u32 %s39, 1
          %s331 = scalar_lea.sflag [#allocation7], %s330
          %s332 = sand.u32 %s39, 1
          %s333 = smul.addr %s332, 8
          %s334 = scalar_lea.vmem [#allocation6], %s333
          %s335 = smul.u32 4, %s29
          %s337 = ssub.s32 128, 128
          %338 = vsyncadd %s331, %s337
          %s339 = smul.addr %s335, 32
          %s340 = scalar_lea.hbm %s0, %s339
          %s341 = sshll.u32 %s334, 4
          %s342 = int_to_ptr.vmem [resolvable:$true] %s341
          %347 = dma.hbm_to_vmem [thread:$0]  %s340, 128, %s342, %s331, 32, 32, 2
        $region40: #{tpu_custom_call.1} parent=35 // pred_fallthru
          _
        // Predicated region
        $region41: #{tpu_custom_call.1} parent=35 // pred_check
          %p348 = pneg %p77
        $region42: #{tpu_custom_call.1} parent=35 // pred_check_branch
          %350 = sbr.rel (%p348) target = $region44
        $region43: #{tpu_custom_call.1} parent=35 // pred_region
          %s351 = sand.u32 %s29, 1
          %s352 = scalar_lea.sflag [#allocation10], %s351
          %s353 = sand.u32 %s67, 1
          %s354 = smul.addr %s353, 8
          %s355 = scalar_lea.vmem [#allocation9], %s354
          %s356 = ssub.s32 1, %s29
          %s357 = smul.u32 4, %s356
          %s359 = ssub.s32 128, 128
          %360 = vsyncadd %s352, %s359
          %s361 = smul.addr %s357, 32
          %s362 = scalar_lea.hbm %s1, %s361
          %s363 = sshll.u32 %s355, 4
          %s364 = int_to_ptr.vmem [resolvable:$true] %s363
          %369 = dma.hbm_to_vmem [thread:$0]  %s362, 128, %s364, %s352, 32, 32, 2
        $region44: #{tpu_custom_call.1} parent=35 // pred_fallthru
          _
      $region36: #{tpu_custom_call.1} parent=5 // pred_fallthru
        _
      %p370 = scmp.le.s32.totalorder 1, %s29
      %p371 = scmp.lt.s32.totalorder %s29, 3
      %p372 = pnand %p370, %p371
      %p373 = pneg %p372
      // Predicated region
      $region45: #{tpu_custom_call.1} parent=5 // pred_check
        _
      $region46: #{tpu_custom_call.1} parent=5 // pred_check_branch
        %375 = sbr.rel (%p372) target = $region48
      $region47: #{tpu_custom_call.1} parent=5 // pred_region
        %s376 = ssub.s32 %s29, 1
        %s377 = sand.u32 %s42, 1
        %s378 = scalar_lea.sflag [#allocation7], %s377
        %s379 = sand.u32 %s42, 1
        %s380 = smul.addr %s379, 8
        %s381 = scalar_lea.vmem [#allocation6], %s380
        // Predicated region
        $region49: #{tpu_custom_call.1} parent=47 // pred_check
          %p382 = pneg %p55
        $region50: #{tpu_custom_call.1} parent=47 // pred_check_branch
          %384 = sbr.rel (%p382) target = $region52
        $region51: #{tpu_custom_call.1} parent=47 // pred_region
          %385 = dma.done %s378, 128
        $region52: #{tpu_custom_call.1} parent=47 // pred_fallthru
          _
        %s386 = sand.u32 %s34, 1
        %s387 = scalar_lea.sflag [#allocation10], %s386
        %s388 = sand.u32 %s70, 1
        %s389 = smul.addr %s388, 8
        %s390 = scalar_lea.vmem [#allocation9], %s389
        // Predicated region
        $region53: #{tpu_custom_call.1} parent=47 // pred_check
          %p391 = pneg %p83
        $region54: #{tpu_custom_call.1} parent=47 // pred_check_branch
          %393 = sbr.rel (%p391) target = $region56
        $region55: #{tpu_custom_call.1} parent=47 // pred_region
          %394 = dma.done %s387, 128
        $region56: #{tpu_custom_call.1} parent=47 // pred_fallthru
          _
        // Predicated region
        $region57: #{tpu_custom_call.1} parent=47 // pred_check
          %p395 = pneg %p104
        $region58: #{tpu_custom_call.1} parent=47 // pred_check_branch
          %397 = sbr.rel (%p395) target = $region60
        $region59: #{tpu_custom_call.1} parent=47 // pred_region
          %398 = dma.done [#allocation10], 256
        $region60: #{tpu_custom_call.1} parent=47 // pred_fallthru
          _
        // Predicated region
        $region61: #{tpu_custom_call.1} parent=47 // pred_check
          %p399 = pneg %p125
        $region62: #{tpu_custom_call.1} parent=47 // pred_check_branch
          %401 = sbr.rel (%p399) target = $region64
        $region63: #{tpu_custom_call.1} parent=47 // pred_region
          %402 = dma.done [#allocation13], 256
        $region64: #{tpu_custom_call.1} parent=47 // pred_fallthru
          _
        // Predicated region
        $region65: #{tpu_custom_call.1} parent=47 // pred_check
          %p403 = pneg %p146
        $region66: #{tpu_custom_call.1} parent=47 // pred_check_branch
          %405 = sbr.rel (%p403) target = $region68
        $region67: #{tpu_custom_call.1} parent=47 // pred_region
          %406 = dma.done [#allocation13], 256
        $region68: #{tpu_custom_call.1} parent=47 // pred_fallthru
          _
        %s407 = sand.u32 %s42, 1
        %s408 = scalar_lea.sflag [#allocation7], %s407
        %s409 = sand.u32 %s42, 1
        %s410 = smul.addr %s409, 8
        %s411 = scalar_lea.vmem [#allocation6], %s410
        %p412 = pneg %p55
        %p413 = pneg %p52
        %s414 = sand.u32 %s34, 1
        %s415 = scalar_lea.sflag [#allocation10], %s414
        %s416 = sand.u32 %s70, 1
        %s417 = smul.addr %s416, 8
        %s418 = scalar_lea.vmem [#allocation9], %s417
        %p419 = pneg %p83
        %p420 = pneg %p80
        %p421 = pneg %p104
        %p422 = pneg %p101
        %p423 = pneg %p125
        %p424 = pneg %p122
        %p425 = pneg %p146
        %p426 = pneg %p143
        %p427 = pneg %p167
        %p428 = pneg %p164
        %p429 = pneg %p188
        %p430 = pneg %p185
        %p431 = pneg %p214
        %p432 = pneg %p211
        %s433 = sand.u32 %s201, 1
        %s434 = scalar_lea.sflag [#allocation8], %s433
        %s435 = sand.u32 %s201, 1
        %s436 = smul.addr %s435, 8
        %s437 = scalar_lea.vmem [#allocation15], %s436
        %p438 = pneg %p242
        %p439 = pneg %p239
        %s440 = sand.u32 %s34, 1
        %s441 = scalar_lea.sflag [#allocation17], %s440
        %s442 = sand.u32 %s229, 1
        %s443 = smul.addr %s442, 8
        %s444 = scalar_lea.vmem [#allocation16], %s443
        %p445 = pneg %p263
        %p446 = pneg %p260
        %s447 = smul.u32 4, %s34
        %s448 = ssub.s32 1, %s34
        %s449 = smul.u32 4, %s448
        %s450 = smul.u32 4, %s34
        %s451 = ssub.s32 1, %s34
        %s452 = smul.u32 4, %s451
        %p454 = scmp.eq.s32.totalorder %s34, 0
        // Predicated region
        $region69: #{tpu_custom_call.1} parent=47 // pred_check
          %p455 = pneg %p454
        $region70: #{tpu_custom_call.1} parent=47 // pred_check_branch
          %457 = sbr.rel (%p455) target = $region72
        $region71: #{tpu_custom_call.1} parent=47 // pred_region
          %vm458 = vcmask 254976
          %459 = vst.msk [vmem:[#allocation2] sm:$0x3] %vm458, 0.0
          %460 = vst.msk [vmem:[#allocation3] sm:$0x3] %vm458, 0.0
          %461 = vst.msk [vmem:[#allocation4] sm:$0x3] %vm458, 0.0
          %462 = vst.msk [vmem:[#allocation5] sm:$0x3] %vm458, 0.0
        $region72: #{tpu_custom_call.1} parent=47 // pred_fallthru
          _
        %v463 = vld [vmem:[%s381] sm:$0x3]
        %v464 = vld [vmem:[#allocation2] sm:$0x3]
        %v465 = vpack.c.bf16 %v464, %v464
        %v466 = vld [vmem:[#allocation11] sm:$0xf]
        %v467 = vld [vmem:[#allocation11 + $0x4] sm:$0xf]
        %v468 = vld [vmem:[#allocation11 + $0x8] sm:$0xf]
        %v469 = vld [vmem:[#allocation11 + $0xc] sm:$0xf]
        %v474 = vunpack.c.l.b16 %v466
        %v475 = vunpack.c.l.b16 %v467
        %v476 = vunpack.c.l.b16 %v468
        %v477 = vunpack.c.l.b16 %v469
        %v478 = vpack.c.b16 %v475, %v474
        %v479 = vpack.c.b16 %v477, %v476
        %vm482 = vcmask 261120
        %v484 = vsel %vm482, %v465, 0
        %486 = vmatprep.subr.bf16.mxu0 0
        %487 = vmatpush1.bf16.msra.mxu0 %v478
        %488 = vmatprep.subr.bf16.mxu0 0
        %489 = vmatpush1.bf16.msra.mxu0 %v479
        %490 = vmatprep.subr.bf16.mxu0 0
        %491 = vmatpush1.bf16.msra.mxu0 0
        %492 = vmatprep.subr.bf16.mxu0 0
        %493 = vmatpush1.bf16.msra.mxu0 0
        %494 = vmatprep.subr.bf16.mxu0 0
        %495 = vmatpush1.bf16.msra.mxu0 0
        %496 = vmatprep.subr.bf16.mxu0 0
        %497 = vmatpush1.bf16.msra.mxu0 0
        %498 = vmatprep.subr.bf16.mxu0 0
        %499 = vmatpush1.bf16.msra.mxu0 0
        %500 = vmatprep.subr.bf16.mxu0 0
        %501 = vmatpush1.bf16.msra.mxu0 0
        %502 = vmatprep.subr.bf16.mxu0 0
        %503 = vmatpush1.bf16.msra.mxu0 0
        %504 = vmatprep.subr.bf16.mxu0 0
        %505 = vmatpush1.bf16.msra.mxu0 0
        %506 = vmatprep.subr.bf16.mxu0 0
        %507 = vmatpush1.bf16.msra.mxu0 0
        %508 = vmatprep.subr.bf16.mxu0 0
        %509 = vmatpush1.bf16.msra.mxu0 0
        %510 = vmatprep.subr.bf16.mxu0 0
        %511 = vmatpush1.bf16.msra.mxu0 0
        %512 = vmatprep.subr.bf16.mxu0 0
        %513 = vmatpush1.bf16.msra.mxu0 0
        %514 = vmatprep.subr.bf16.mxu0 0
        %515 = vmatpush1.bf16.msra.mxu0 0
        %516 = vmatprep.subr.bf16.mxu0 0
        %517 = vmatpush1.bf16.msra.mxu0 0
        %518 = vmatprep.mubr.bf16.mxu0 0
        %519 = vmatmul.mubr.bf16.gmra.mrb[0].mxu0 %v484
        %v520 = vpop.f32.mrb[0].mxu0
        %v521 = vadd.f32 0.0, %v520
        %v522 = vpop.f32.mrb[0].mxu0
        %v523 = vpop.f32.mrb[0].mxu0
        %v524 = vpop.f32.mrb[0].mxu0
        %525 = vdwg.mxu0
        %v526 = vadd.f32 %v463, %v521
        %v527 = vld [vmem:[#allocation3] sm:$0x3]
        %v528 = vxor.u32 %v526, 2147483648
        %v529 = vmul.f32 %v528, 1.442695
        %v530 = vpow.pop %v529
        %v531 = vadd.f32 %v530, 1.0
        %v532 = vrcp.pop %v531
        %v533 = vmul.f32 1.0, %v532
        %v534 = vtanh.pop %v526
        %536 = vrot.lane.b32.xlu0 %v527, 32
        %v537 = vpop.permute.xlu0 %536
        %v539 = vmul.f32 %v533, %v537
        %541 = vrot.lane.b32.xlu0 %v534, 64
        %v542 = vpop.permute.xlu0 %541
        %v544 = vmul.f32 %v533, %v542
        %546 = vrot.lane.b32.xlu0 %v544, 32
        %v547 = vpop.permute.xlu0 %546
        %v549 = vadd.f32 %v539, %v547
        %v550 = vtanh.pop %v549
        %552 = vrot.lane.b32.xlu0 %v550, 64
        %v553 = vpop.permute.xlu0 %552
        %v555 = vmul.f32 %v533, %v553
        %557 = vrot.lane.b32.xlu0 %v555, 32
        %v558 = vpop.permute.xlu0 %557
        %vm560 = vcmask 254976
        %561 = vst.msk [vmem:[#allocation2] sm:$0x3] %vm560, %v558
        %563 = vrot.lane.b32.xlu0 %v549, 96
        %v564 = vpop.permute.xlu0 %563
        %566 = vst.msk [vmem:[#allocation3] sm:$0x3] %vm560, %v564
        %567 = vst.msk [vmem:[%s437] sm:$0x3] %vm560, %v558
        %s568 = scalar_lea.vmem %s390, 6 [#allocation9]
        %v569 = vld [vmem:[%s568] sm:$0x3]
        %v570 = vld [vmem:[#allocation4] sm:$0x3]
        %v571 = vpack.c.bf16 %v570, %v570
        %v572 = vld [vmem:[#allocation12] sm:$0xf]
        %v573 = vld [vmem:[#allocation12 + $0x4] sm:$0xf]
        %v574 = vld [vmem:[#allocation12 + $0x8] sm:$0xf]
        %v575 = vld [vmem:[#allocation12 + $0xc] sm:$0xf]
        %v580 = vunpack.c.l.b16 %v572
        %v581 = vunpack.c.l.b16 %v573
        %v582 = vunpack.c.l.b16 %v574
        %v583 = vunpack.c.l.b16 %v575
        %v584 = vpack.c.b16 %v581, %v580
        %v585 = vpack.c.b16 %v583, %v582
        %v589 = vsel %vm482, %v571, 0
        %591 = vmatprep.subr.bf16.mxu0 0
        %592 = vmatpush1.bf16.msra.mxu0 %v584
        %593 = vmatprep.subr.bf16.mxu0 0
        %594 = vmatpush1.bf16.msra.mxu0 %v585
        %595 = vmatprep.subr.bf16.mxu0 0
        %596 = vmatpush1.bf16.msra.mxu0 0
        %597 = vmatprep.subr.bf16.mxu0 0
        %598 = vmatpush1.bf16.msra.mxu0 0
        %599 = vmatprep.subr.bf16.mxu0 0
        %600 = vmatpush1.bf16.msra.mxu0 0
        %601 = vmatprep.subr.bf16.mxu0 0
        %602 = vmatpush1.bf16.msra.mxu0 0
        %603 = vmatprep.subr.bf16.mxu0 0
        %604 = vmatpush1.bf16.msra.mxu0 0
        %605 = vmatprep.subr.bf16.mxu0 0
        %606 = vmatpush1.bf16.msra.mxu0 0
        %607 = vmatprep.subr.bf16.mxu0 0
        %608 = vmatpush1.bf16.msra.mxu0 0
        %609 = vmatprep.subr.bf16.mxu0 0
        %610 = vmatpush1.bf16.msra.mxu0 0
        %611 = vmatprep.subr.bf16.mxu0 0
        %612 = vmatpush1.bf16.msra.mxu0 0
        %613 = vmatprep.subr.bf16.mxu0 0
        %614 = vmatpush1.bf16.msra.mxu0 0
        %615 = vmatprep.subr.bf16.mxu0 0
        %616 = vmatpush1.bf16.msra.mxu0 0
        %617 = vmatprep.subr.bf16.mxu0 0
        %618 = vmatpush1.bf16.msra.mxu0 0
        %619 = vmatprep.subr.bf16.mxu0 0
        %620 = vmatpush1.bf16.msra.mxu0 0
        %621 = vmatprep.subr.bf16.mxu0 0
        %622 = vmatpush1.bf16.msra.mxu0 0
        %623 = vmatprep.mubr.bf16.mxu0 0
        %624 = vmatmul.mubr.bf16.gmra.mrb[0].mxu0 %v589
        %v625 = vpop.f32.mrb[0].mxu0
        %v626 = vadd.f32 0.0, %v625
        %v627 = vpop.f32.mrb[0].mxu0
        %v628 = vpop.f32.mrb[0].mxu0
        %v629 = vpop.f32.mrb[0].mxu0
        %630 = vdwg.mxu0
        %v631 = vadd.f32 %v569, %v626
        %v632 = vld [vmem:[#allocation5] sm:$0x3]
        %v633 = vxor.u32 %v631, 2147483648
        %v634 = vmul.f32 %v633, 1.442695
        %v635 = vpow.pop %v634
        %v636 = vadd.f32 %v635, 1.0
        %v637 = vrcp.pop %v636
        %v638 = vmul.f32 1.0, %v637
        %v639 = vtanh.pop %v631
        %641 = vrot.lane.b32.xlu0 %v632, 32
        %v642 = vpop.permute.xlu0 %641
        %v644 = vmul.f32 %v638, %v642
        %646 = vrot.lane.b32.xlu0 %v639, 64
        %v647 = vpop.permute.xlu0 %646
        %v649 = vmul.f32 %v638, %v647
        %651 = vrot.lane.b32.xlu0 %v649, 32
        %v652 = vpop.permute.xlu0 %651
        %v654 = vadd.f32 %v644, %v652
        %v655 = vtanh.pop %v654
        %657 = vrot.lane.b32.xlu0 %v655, 64
        %v658 = vpop.permute.xlu0 %657
        %v660 = vmul.f32 %v638, %v658
        %662 = vrot.lane.b32.xlu0 %v660, 32
        %v663 = vpop.permute.xlu0 %662
        %665 = vst.msk [vmem:[#allocation4] sm:$0x3] %vm560, %v663
        %667 = vrot.lane.b32.xlu0 %v654, 96
        %v668 = vpop.permute.xlu0 %667
        %670 = vst.msk [vmem:[#allocation5] sm:$0x3] %vm560, %v668
        %s671 = scalar_lea.vmem %s444, 6 [#allocation16]
        %672 = vst.msk [vmem:[%s671] sm:$0x3] %vm560, %v663
        %s673 = scalar_lea.vmem %s381, 2 [#allocation6]
        %v674 = vld [vmem:[%s673] sm:$0x3]
        %v675 = vld [vmem:[#allocation2] sm:$0x3]
        %v676 = vpack.c.bf16 %v675, %v675
        %v677 = vld [vmem:[#allocation11] sm:$0xf]
        %v678 = vld [vmem:[#allocation11 + $0x4] sm:$0xf]
        %v679 = vld [vmem:[#allocation11 + $0x8] sm:$0xf]
        %v680 = vld [vmem:[#allocation11 + $0xc] sm:$0xf]
        %v685 = vunpack.c.l.b16 %v677
        %v686 = vunpack.c.l.b16 %v678
        %v687 = vunpack.c.l.b16 %v679
        %v688 = vunpack.c.l.b16 %v680
        %v689 = vpack.c.b16 %v686, %v685
        %v690 = vpack.c.b16 %v688, %v687
        %v694 = vsel %vm482, %v676, 0
        %696 = vmatprep.subr.bf16.mxu0 0
        %697 = vmatpush1.bf16.msra.mxu0 %v689
        %698 = vmatprep.subr.bf16.mxu0 0
        %699 = vmatpush1.bf16.msra.mxu0 %v690
        %700 = vmatprep.subr.bf16.mxu0 0
        %701 = vmatpush1.bf16.msra.mxu0 0
        %702 = vmatprep.subr.bf16.mxu0 0
        %703 = vmatpush1.bf16.msra.mxu0 0
        %704 = vmatprep.subr.bf16.mxu0 0
        %705 = vmatpush1.bf16.msra.mxu0 0
        %706 = vmatprep.subr.bf16.mxu0 0
        %707 = vmatpush1.bf16.msra.mxu0 0
        %708 = vmatprep.subr.bf16.mxu0 0
        %709 = vmatpush1.bf16.msra.mxu0 0
        %710 = vmatprep.subr.bf16.mxu0 0
        %711 = vmatpush1.bf16.msra.mxu0 0
        %712 = vmatprep.subr.bf16.mxu0 0
        %713 = vmatpush1.bf16.msra.mxu0 0
        %714 = vmatprep.subr.bf16.mxu0 0
        %715 = vmatpush1.bf16.msra.mxu0 0
        %716 = vmatprep.subr.bf16.mxu0 0
        %717 = vmatpush1.bf16.msra.mxu0 0
        %718 = vmatprep.subr.bf16.mxu0 0
        %719 = vmatpush1.bf16.msra.mxu0 0
        %720 = vmatprep.subr.bf16.mxu0 0
        %721 = vmatpush1.bf16.msra.mxu0 0
        %722 = vmatprep.subr.bf16.mxu0 0
        %723 = vmatpush1.bf16.msra.mxu0 0
        %724 = vmatprep.subr.bf16.mxu0 0
        %725 = vmatpush1.bf16.msra.mxu0 0
        %726 = vmatprep.subr.bf16.mxu0 0
        %727 = vmatpush1.bf16.msra.mxu0 0
        %728 = vmatprep.mubr.bf16.mxu0 0
        %729 = vmatmul.mubr.bf16.gmra.mrb[0].mxu0 %v694
        %v730 = vpop.f32.mrb[0].mxu0
        %v731 = vadd.f32 0.0, %v730
        %v732 = vpop.f32.mrb[0].mxu0
        %v733 = vpop.f32.mrb[0].mxu0
        %v734 = vpop.f32.mrb[0].mxu0
        %735 = vdwg.mxu0
        %v736 = vadd.f32 %v674, %v731
        %v737 = vld [vmem:[#allocation3] sm:$0x3]
        %v738 = vxor.u32 %v736, 2147483648
        %v739 = vmul.f32 %v738, 1.442695
        %v740 = vpow.pop %v739
        %v741 = vadd.f32 %v740, 1.0
        %v742 = vrcp.pop %v741
        %v743 = vmul.f32 1.0, %v742
        %v744 = vtanh.pop %v736
        %746 = vrot.lane.b32.xlu0 %v737, 32
        %v747 = vpop.permute.xlu0 %746
        %v749 = vmul.f32 %v743, %v747
        %751 = vrot.lane.b32.xlu0 %v744, 64
        %v752 = vpop.permute.xlu0 %751
        %v754 = vmul.f32 %v743, %v752
        %756 = vrot.lane.b32.xlu0 %v754, 32
        %v757 = vpop.permute.xlu0 %756
        %v759 = vadd.f32 %v749, %v757
        %v760 = vtanh.pop %v759
        %762 = vrot.lane.b32.xlu0 %v760, 64
        %v763 = vpop.permute.xlu0 %762
        %v765 = vmul.f32 %v743, %v763
        %767 = vrot.lane.b32.xlu0 %v765, 32
        %v768 = vpop.permute.xlu0 %767
        %770 = vst.msk [vmem:[#allocation2] sm:$0x3] %vm560, %v768
        %772 = vrot.lane.b32.xlu0 %v759, 96
        %v773 = vpop.permute.xlu0 %772
        %775 = vst.msk [vmem:[#allocation3] sm:$0x3] %vm560, %v773
        %s776 = scalar_lea.vmem %s437, 2 [#allocation15]
        %777 = vst.msk [vmem:[%s776] sm:$0x3] %vm560, %v768
        %s778 = scalar_lea.vmem %s390, 4 [#allocation9]
        %v779 = vld [vmem:[%s778] sm:$0x3]
        %v780 = vld [vmem:[#allocation4] sm:$0x3]
        %v781 = vpack.c.bf16 %v780, %v780
        %v782 = vld [vmem:[#allocation12] sm:$0xf]
        %v783 = vld [vmem:[#allocation12 + $0x4] sm:$0xf]
        %v784 = vld [vmem:[#allocation12 + $0x8] sm:$0xf]
        %v785 = vld [vmem:[#allocation12 + $0xc] sm:$0xf]
        %v790 = vunpack.c.l.b16 %v782
        %v791 = vunpack.c.l.b16 %v783
        %v792 = vunpack.c.l.b16 %v784
        %v793 = vunpack.c.l.b16 %v785
        %v794 = vpack.c.b16 %v791, %v790
        %v795 = vpack.c.b16 %v793, %v792
        %v799 = vsel %vm482, %v781, 0
        %801 = vmatprep.subr.bf16.mxu0 0
        %802 = vmatpush1.bf16.msra.mxu0 %v794
        %803 = vmatprep.subr.bf16.mxu0 0
        %804 = vmatpush1.bf16.msra.mxu0 %v795
        %805 = vmatprep.subr.bf16.mxu0 0
        %806 = vmatpush1.bf16.msra.mxu0 0
        %807 = vmatprep.subr.bf16.mxu0 0
        %808 = vmatpush1.bf16.msra.mxu0 0
        %809 = vmatprep.subr.bf16.mxu0 0
        %810 = vmatpush1.bf16.msra.mxu0 0
        %811 = vmatprep.subr.bf16.mxu0 0
        %812 = vmatpush1.bf16.msra.mxu0 0
        %813 = vmatprep.subr.bf16.mxu0 0
        %814 = vmatpush1.bf16.msra.mxu0 0
        %815 = vmatprep.subr.bf16.mxu0 0
        %816 = vmatpush1.bf16.msra.mxu0 0
        %817 = vmatprep.subr.bf16.mxu0 0
        %818 = vmatpush1.bf16.msra.mxu0 0
        %819 = vmatprep.subr.bf16.mxu0 0
        %820 = vmatpush1.bf16.msra.mxu0 0
        %821 = vmatprep.subr.bf16.mxu0 0
        %822 = vmatpush1.bf16.msra.mxu0 0
        %823 = vmatprep.subr.bf16.mxu0 0
        %824 = vmatpush1.bf16.msra.mxu0 0
        %825 = vmatprep.subr.bf16.mxu0 0
        %826 = vmatpush1.bf16.msra.mxu0 0
        %827 = vmatprep.subr.bf16.mxu0 0
        %828 = vmatpush1.bf16.msra.mxu0 0
        %829 = vmatprep.subr.bf16.mxu0 0
        %830 = vmatpush1.bf16.msra.mxu0 0
        %831 = vmatprep.subr.bf16.mxu0 0
        %832 = vmatpush1.bf16.msra.mxu0 0
        %833 = vmatprep.mubr.bf16.mxu0 0
        %834 = vmatmul.mubr.bf16.gmra.mrb[0].mxu0 %v799
        %v835 = vpop.f32.mrb[0].mxu0
        %v836 = vadd.f32 0.0, %v835
        %v837 = vpop.f32.mrb[0].mxu0
        %v838 = vpop.f32.mrb[0].mxu0
        %v839 = vpop.f32.mrb[0].mxu0
        %840 = vdwg.mxu0
        %v841 = vadd.f32 %v779, %v836
        %v842 = vld [vmem:[#allocation5] sm:$0x3]
        %v843 = vxor.u32 %v841, 2147483648
        %v844 = vmul.f32 %v843, 1.442695
        %v845 = vpow.pop %v844
        %v846 = vadd.f32 %v845, 1.0
        %v847 = vrcp.pop %v846
        %v848 = vmul.f32 1.0, %v847
        %v849 = vtanh.pop %v841
        %851 = vrot.lane.b32.xlu0 %v842, 32
        %v852 = vpop.permute.xlu0 %851
        %v854 = vmul.f32 %v848, %v852
        %856 = vrot.lane.b32.xlu0 %v849, 64
        %v857 = vpop.permute.xlu0 %856
        %v859 = vmul.f32 %v848, %v857
        %861 = vrot.lane.b32.xlu0 %v859, 32
        %v862 = vpop.permute.xlu0 %861
        %v864 = vadd.f32 %v854, %v862
        %v865 = vtanh.pop %v864
        %867 = vrot.lane.b32.xlu0 %v865, 64
        %v868 = vpop.permute.xlu0 %867
        %v870 = vmul.f32 %v848, %v868
        %872 = vrot.lane.b32.xlu0 %v870, 32
        %v873 = vpop.permute.xlu0 %872
        %875 = vst.msk [vmem:[#allocation4] sm:$0x3] %vm560, %v873
        %877 = vrot.lane.b32.xlu0 %v864, 96
        %v878 = vpop.permute.xlu0 %877
        %880 = vst.msk [vmem:[#allocation5] sm:$0x3] %vm560, %v878
        %s881 = scalar_lea.vmem %s444, 4 [#allocation16]
        %882 = vst.msk [vmem:[%s881] sm:$0x3] %vm560, %v873
        %s883 = scalar_lea.vmem %s381, 4 [#allocation6]
        %v884 = vld [vmem:[%s883] sm:$0x3]
        %v885 = vld [vmem:[#allocation2] sm:$0x3]
        %v886 = vpack.c.bf16 %v885, %v885
        %v887 = vld [vmem:[#allocation11] sm:$0xf]
        %v888 = vld [vmem:[#allocation11 + $0x4] sm:$0xf]
        %v889 = vld [vmem:[#allocation11 + $0x8] sm:$0xf]
        %v890 = vld [vmem:[#allocation11 + $0xc] sm:$0xf]
        %v895 = vunpack.c.l.b16 %v887
        %v896 = vunpack.c.l.b16 %v888
        %v897 = vunpack.c.l.b16 %v889
        %v898 = vunpack.c.l.b16 %v890
        %v899 = vpack.c.b16 %v896, %v895
        %v900 = vpack.c.b16 %v898, %v897
        %v904 = vsel %vm482, %v886, 0
        %906 = vmatprep.subr.bf16.mxu0 0
        %907 = vmatpush1.bf16.msra.mxu0 %v899
        %908 = vmatprep.subr.bf16.mxu0 0
        %909 = vmatpush1.bf16.msra.mxu0 %v900
        %910 = vmatprep.subr.bf16.mxu0 0
        %911 = vmatpush1.bf16.msra.mxu0 0
        %912 = vmatprep.subr.bf16.mxu0 0
        %913 = vmatpush1.bf16.msra.mxu0 0
        %914 = vmatprep.subr.bf16.mxu0 0
        %915 = vmatpush1.bf16.msra.mxu0 0
        %916 = vmatprep.subr.bf16.mxu0 0
        %917 = vmatpush1.bf16.msra.mxu0 0
        %918 = vmatprep.subr.bf16.mxu0 0
        %919 = vmatpush1.bf16.msra.mxu0 0
        %920 = vmatprep.subr.bf16.mxu0 0
        %921 = vmatpush1.bf16.msra.mxu0 0
        %922 = vmatprep.subr.bf16.mxu0 0
        %923 = vmatpush1.bf16.msra.mxu0 0
        %924 = vmatprep.subr.bf16.mxu0 0
        %925 = vmatpush1.bf16.msra.mxu0 0
        %926 = vmatprep.subr.bf16.mxu0 0
        %927 = vmatpush1.bf16.msra.mxu0 0
        %928 = vmatprep.subr.bf16.mxu0 0
        %929 = vmatpush1.bf16.msra.mxu0 0
        %930 = vmatprep.subr.bf16.mxu0 0
        %931 = vmatpush1.bf16.msra.mxu0 0
        %932 = vmatprep.subr.bf16.mxu0 0
        %933 = vmatpush1.bf16.msra.mxu0 0
        %934 = vmatprep.subr.bf16.mxu0 0
        %935 = vmatpush1.bf16.msra.mxu0 0
        %936 = vmatprep.subr.bf16.mxu0 0
        %937 = vmatpush1.bf16.msra.mxu0 0
        %938 = vmatprep.mubr.bf16.mxu0 0
        %939 = vmatmul.mubr.bf16.gmra.mrb[0].mxu0 %v904
        %v940 = vpop.f32.mrb[0].mxu0
        %v941 = vadd.f32 0.0, %v940
        %v942 = vpop.f32.mrb[0].mxu0
        %v943 = vpop.f32.mrb[0].mxu0
        %v944 = vpop.f32.mrb[0].mxu0
        %945 = vdwg.mxu0
        %v946 = vadd.f32 %v884, %v941
        %v947 = vld [vmem:[#allocation3] sm:$0x3]
        %v948 = vxor.u32 %v946, 2147483648
        %v949 = vmul.f32 %v948, 1.442695
        %v950 = vpow.pop %v949
        %v951 = vadd.f32 %v950, 1.0
        %v952 = vrcp.pop %v951
        %v953 = vmul.f32 1.0, %v952
        %v954 = vtanh.pop %v946
        %956 = vrot.lane.b32.xlu0 %v947, 32
        %v957 = vpop.permute.xlu0 %956
        %v959 = vmul.f32 %v953, %v957
        %961 = vrot.lane.b32.xlu0 %v954, 64
        %v962 = vpop.permute.xlu0 %961
        %v964 = vmul.f32 %v953, %v962
        %966 = vrot.lane.b32.xlu0 %v964, 32
        %v967 = vpop.permute.xlu0 %966
        %v969 = vadd.f32 %v959, %v967
        %v970 = vtanh.pop %v969
        %972 = vrot.lane.b32.xlu0 %v970, 64
        %v973 = vpop.permute.xlu0 %972
        %v975 = vmul.f32 %v953, %v973
        %977 = vrot.lane.b32.xlu0 %v975, 32
        %v978 = vpop.permute.xlu0 %977
        %980 = vst.msk [vmem:[#allocation2] sm:$0x3] %vm560, %v978
        %982 = vrot.lane.b32.xlu0 %v969, 96
        %v983 = vpop.permute.xlu0 %982
        %985 = vst.msk [vmem:[#allocation3] sm:$0x3] %vm560, %v983
        %s986 = scalar_lea.vmem %s437, 4 [#allocation15]
        %987 = vst.msk [vmem:[%s986] sm:$0x3] %vm560, %v978
        %s988 = scalar_lea.vmem %s390, 2 [#allocation9]
        %v989 = vld [vmem:[%s988] sm:$0x3]
        %v990 = vld [vmem:[#allocation4] sm:$0x3]
        %v991 = vpack.c.bf16 %v990, %v990
        %v992 = vld [vmem:[#allocation12] sm:$0xf]
        %v993 = vld [vmem:[#allocation12 + $0x4] sm:$0xf]
        %v994 = vld [vmem:[#allocation12 + $0x8] sm:$0xf]
        %v995 = vld [vmem:[#allocation12 + $0xc] sm:$0xf]
        %v1000 = vunpack.c.l.b16 %v992
        %v1001 = vunpack.c.l.b16 %v993
        %v1002 = vunpack.c.l.b16 %v994
        %v1003 = vunpack.c.l.b16 %v995
        %v1004 = vpack.c.b16 %v1001, %v1000
        %v1005 = vpack.c.b16 %v1003, %v1002
        %v1009 = vsel %vm482, %v991, 0
        %1011 = vmatprep.subr.bf16.mxu0 0
        %1012 = vmatpush1.bf16.msra.mxu0 %v1004
        %1013 = vmatprep.subr.bf16.mxu0 0
        %1014 = vmatpush1.bf16.msra.mxu0 %v1005
        %1015 = vmatprep.subr.bf16.mxu0 0
        %1016 = vmatpush1.bf16.msra.mxu0 0
        %1017 = vmatprep.subr.bf16.mxu0 0
        %1018 = vmatpush1.bf16.msra.mxu0 0
        %1019 = vmatprep.subr.bf16.mxu0 0
        %1020 = vmatpush1.bf16.msra.mxu0 0
        %1021 = vmatprep.subr.bf16.mxu0 0
        %1022 = vmatpush1.bf16.msra.mxu0 0
        %1023 = vmatprep.subr.bf16.mxu0 0
        %1024 = vmatpush1.bf16.msra.mxu0 0
        %1025 = vmatprep.subr.bf16.mxu0 0
        %1026 = vmatpush1.bf16.msra.mxu0 0
        %1027 = vmatprep.subr.bf16.mxu0 0
        %1028 = vmatpush1.bf16.msra.mxu0 0
        %1029 = vmatprep.subr.bf16.mxu0 0
        %1030 = vmatpush1.bf16.msra.mxu0 0
        %1031 = vmatprep.subr.bf16.mxu0 0
        %1032 = vmatpush1.bf16.msra.mxu0 0
        %1033 = vmatprep.subr.bf16.mxu0 0
        %1034 = vmatpush1.bf16.msra.mxu0 0
        %1035 = vmatprep.subr.bf16.mxu0 0
        %1036 = vmatpush1.bf16.msra.mxu0 0
        %1037 = vmatprep.subr.bf16.mxu0 0
        %1038 = vmatpush1.bf16.msra.mxu0 0
        %1039 = vmatprep.subr.bf16.mxu0 0
        %1040 = vmatpush1.bf16.msra.mxu0 0
        %1041 = vmatprep.subr.bf16.mxu0 0
        %1042 = vmatpush1.bf16.msra.mxu0 0
        %1043 = vmatprep.mubr.bf16.mxu0 0
        %1044 = vmatmul.mubr.bf16.gmra.mrb[0].mxu0 %v1009
        %v1045 = vpop.f32.mrb[0].mxu0
        %v1046 = vadd.f32 0.0, %v1045
        %v1047 = vpop.f32.mrb[0].mxu0
        %v1048 = vpop.f32.mrb[0].mxu0
        %v1049 = vpop.f32.mrb[0].mxu0
        %1050 = vdwg.mxu0
        %v1051 = vadd.f32 %v989, %v1046
        %v1052 = vld [vmem:[#allocation5] sm:$0x3]
        %v1053 = vxor.u32 %v1051, 2147483648
        %v1054 = vmul.f32 %v1053, 1.442695
        %v1055 = vpow.pop %v1054
        %v1056 = vadd.f32 %v1055, 1.0
        %v1057 = vrcp.pop %v1056
        %v1058 = vmul.f32 1.0, %v1057
        %v1059 = vtanh.pop %v1051
        %1061 = vrot.lane.b32.xlu0 %v1052, 32
        %v1062 = vpop.permute.xlu0 %1061
        %v1064 = vmul.f32 %v1058, %v1062
        %1066 = vrot.lane.b32.xlu0 %v1059, 64
        %v1067 = vpop.permute.xlu0 %1066
        %v1069 = vmul.f32 %v1058, %v1067
        %1071 = vrot.lane.b32.xlu0 %v1069, 32
        %v1072 = vpop.permute.xlu0 %1071
        %v1074 = vadd.f32 %v1064, %v1072
        %v1075 = vtanh.pop %v1074
        %1077 = vrot.lane.b32.xlu0 %v1075, 64
        %v1078 = vpop.permute.xlu0 %1077
        %v1080 = vmul.f32 %v1058, %v1078
        %1082 = vrot.lane.b32.xlu0 %v1080, 32
        %v1083 = vpop.permute.xlu0 %1082
        %1085 = vst.msk [vmem:[#allocation4] sm:$0x3] %vm560, %v1083
        %1087 = vrot.lane.b32.xlu0 %v1074, 96
        %v1088 = vpop.permute.xlu0 %1087
        %1090 = vst.msk [vmem:[#allocation5] sm:$0x3] %vm560, %v1088
        %s1091 = scalar_lea.vmem %s444, 2 [#allocation16]
        %1092 = vst.msk [vmem:[%s1091] sm:$0x3] %vm560, %v1083
        %s1093 = scalar_lea.vmem %s381, 6 [#allocation6]
        %v1094 = vld [vmem:[%s1093] sm:$0x3]
        %v1095 = vld [vmem:[#allocation2] sm:$0x3]
        %v1096 = vpack.c.bf16 %v1095, %v1095
        %v1097 = vld [vmem:[#allocation11] sm:$0xf]
        %v1098 = vld [vmem:[#allocation11 + $0x4] sm:$0xf]
        %v1099 = vld [vmem:[#allocation11 + $0x8] sm:$0xf]
        %v1100 = vld [vmem:[#allocation11 + $0xc] sm:$0xf]
        %v1105 = vunpack.c.l.b16 %v1097
        %v1106 = vunpack.c.l.b16 %v1098
        %v1107 = vunpack.c.l.b16 %v1099
        %v1108 = vunpack.c.l.b16 %v1100
        %v1109 = vpack.c.b16 %v1106, %v1105
        %v1110 = vpack.c.b16 %v1108, %v1107
        %v1114 = vsel %vm482, %v1096, 0
        %1116 = vmatprep.subr.bf16.mxu0 0
        %1117 = vmatpush1.bf16.msra.mxu0 %v1109
        %1118 = vmatprep.subr.bf16.mxu0 0
        %1119 = vmatpush1.bf16.msra.mxu0 %v1110
        %1120 = vmatprep.subr.bf16.mxu0 0
        %1121 = vmatpush1.bf16.msra.mxu0 0
        %1122 = vmatprep.subr.bf16.mxu0 0
        %1123 = vmatpush1.bf16.msra.mxu0 0
        %1124 = vmatprep.subr.bf16.mxu0 0
        %1125 = vmatpush1.bf16.msra.mxu0 0
        %1126 = vmatprep.subr.bf16.mxu0 0
        %1127 = vmatpush1.bf16.msra.mxu0 0
        %1128 = vmatprep.subr.bf16.mxu0 0
        %1129 = vmatpush1.bf16.msra.mxu0 0
        %1130 = vmatprep.subr.bf16.mxu0 0
        %1131 = vmatpush1.bf16.msra.mxu0 0
        %1132 = vmatprep.subr.bf16.mxu0 0
        %1133 = vmatpush1.bf16.msra.mxu0 0
        %1134 = vmatprep.subr.bf16.mxu0 0
        %1135 = vmatpush1.bf16.msra.mxu0 0
        %1136 = vmatprep.subr.bf16.mxu0 0
        %1137 = vmatpush1.bf16.msra.mxu0 0
        %1138 = vmatprep.subr.bf16.mxu0 0
        %1139 = vmatpush1.bf16.msra.mxu0 0
        %1140 = vmatprep.subr.bf16.mxu0 0
        %1141 = vmatpush1.bf16.msra.mxu0 0
        %1142 = vmatprep.subr.bf16.mxu0 0
        %1143 = vmatpush1.bf16.msra.mxu0 0
        %1144 = vmatprep.subr.bf16.mxu0 0
        %1145 = vmatpush1.bf16.msra.mxu0 0
        %1146 = vmatprep.subr.bf16.mxu0 0
        %1147 = vmatpush1.bf16.msra.mxu0 0
        %1148 = vmatprep.mubr.bf16.mxu0 0
        %1149 = vmatmul.mubr.bf16.gmra.mrb[0].mxu0 %v1114
        %v1150 = vpop.f32.mrb[0].mxu0
        %v1151 = vadd.f32 0.0, %v1150
        %v1152 = vpop.f32.mrb[0].mxu0
        %v1153 = vpop.f32.mrb[0].mxu0
        %v1154 = vpop.f32.mrb[0].mxu0
        %1155 = vdwg.mxu0
        %v1156 = vadd.f32 %v1094, %v1151
        %v1157 = vld [vmem:[#allocation3] sm:$0x3]
        %v1158 = vxor.u32 %v1156, 2147483648
        %v1159 = vmul.f32 %v1158, 1.442695
        %v1160 = vpow.pop %v1159
        %v1161 = vadd.f32 %v1160, 1.0
        %v1162 = vrcp.pop %v1161
        %v1163 = vmul.f32 1.0, %v1162
        %v1164 = vtanh.pop %v1156
        %1166 = vrot.lane.b32.xlu0 %v1157, 32
        %v1167 = vpop.permute.xlu0 %1166
        %v1169 = vmul.f32 %v1163, %v1167
        %1171 = vrot.lane.b32.xlu0 %v1164, 64
        %v1172 = vpop.permute.xlu0 %1171
        %v1174 = vmul.f32 %v1163, %v1172
        %1176 = vrot.lane.b32.xlu0 %v1174, 32
        %v1177 = vpop.permute.xlu0 %1176
        %v1179 = vadd.f32 %v1169, %v1177
        %v1180 = vtanh.pop %v1179
        %1182 = vrot.lane.b32.xlu0 %v1180, 64
        %v1183 = vpop.permute.xlu0 %1182
        %v1185 = vmul.f32 %v1163, %v1183
        %1187 = vrot.lane.b32.xlu0 %v1185, 32
        %v1188 = vpop.permute.xlu0 %1187
        %1190 = vst.msk [vmem:[#allocation2] sm:$0x3] %vm560, %v1188
        %1192 = vrot.lane.b32.xlu0 %v1179, 96
        %v1193 = vpop.permute.xlu0 %1192
        %1195 = vst.msk [vmem:[#allocation3] sm:$0x3] %vm560, %v1193
        %s1196 = scalar_lea.vmem %s437, 6 [#allocation15]
        %1197 = vst.msk [vmem:[%s1196] sm:$0x3] %vm560, %v1188
        %v1198 = vld [vmem:[%s390] sm:$0x3]
        %v1199 = vld [vmem:[#allocation4] sm:$0x3]
        %v1200 = vpack.c.bf16 %v1199, %v1199
        %v1201 = vld [vmem:[#allocation12] sm:$0xf]
        %v1202 = vld [vmem:[#allocation12 + $0x4] sm:$0xf]
        %v1203 = vld [vmem:[#allocation12 + $0x8] sm:$0xf]
        %v1204 = vld [vmem:[#allocation12 + $0xc] sm:$0xf]
        %v1209 = vunpack.c.l.b16 %v1201
        %v1210 = vunpack.c.l.b16 %v1202
        %v1211 = vunpack.c.l.b16 %v1203
        %v1212 = vunpack.c.l.b16 %v1204
        %v1213 = vpack.c.b16 %v1210, %v1209
        %v1214 = vpack.c.b16 %v1212, %v1211
        %v1218 = vsel %vm482, %v1200, 0
        %1220 = vmatprep.subr.bf16.mxu0 0
        %1221 = vmatpush1.bf16.msra.mxu0 %v1213
        %1222 = vmatprep.subr.bf16.mxu0 0
        %1223 = vmatpush1.bf16.msra.mxu0 %v1214
        %1224 = vmatprep.subr.bf16.mxu0 0
        %1225 = vmatpush1.bf16.msra.mxu0 0
        %1226 = vmatprep.subr.bf16.mxu0 0
        %1227 = vmatpush1.bf16.msra.mxu0 0
        %1228 = vmatprep.subr.bf16.mxu0 0
        %1229 = vmatpush1.bf16.msra.mxu0 0
        %1230 = vmatprep.subr.bf16.mxu0 0
        %1231 = vmatpush1.bf16.msra.mxu0 0
        %1232 = vmatprep.subr.bf16.mxu0 0
        %1233 = vmatpush1.bf16.msra.mxu0 0
        %1234 = vmatprep.subr.bf16.mxu0 0
        %1235 = vmatpush1.bf16.msra.mxu0 0
        %1236 = vmatprep.subr.bf16.mxu0 0
        %1237 = vmatpush1.bf16.msra.mxu0 0
        %1238 = vmatprep.subr.bf16.mxu0 0
        %1239 = vmatpush1.bf16.msra.mxu0 0
        %1240 = vmatprep.subr.bf16.mxu0 0
        %1241 = vmatpush1.bf16.msra.mxu0 0
        %1242 = vmatprep.subr.bf16.mxu0 0
        %1243 = vmatpush1.bf16.msra.mxu0 0
        %1244 = vmatprep.subr.bf16.mxu0 0
        %1245 = vmatpush1.bf16.msra.mxu0 0
        %1246 = vmatprep.subr.bf16.mxu0 0
        %1247 = vmatpush1.bf16.msra.mxu0 0
        %1248 = vmatprep.subr.bf16.mxu0 0
        %1249 = vmatpush1.bf16.msra.mxu0 0
        %1250 = vmatprep.subr.bf16.mxu0 0
        %1251 = vmatpush1.bf16.msra.mxu0 0
        %1252 = vmatprep.mubr.bf16.mxu0 0
        %1253 = vmatmul.mubr.bf16.gmra.mrb[0].mxu0 %v1218
        %v1254 = vpop.f32.mrb[0].mxu0
        %v1255 = vadd.f32 0.0, %v1254
        %v1256 = vpop.f32.mrb[0].mxu0
        %v1257 = vpop.f32.mrb[0].mxu0
        %v1258 = vpop.f32.mrb[0].mxu0
        %1259 = vdwg.mxu0
        %v1260 = vadd.f32 %v1198, %v1255
        %v1261 = vld [vmem:[#allocation5] sm:$0x3]
        %v1262 = vxor.u32 %v1260, 2147483648
        %v1263 = vmul.f32 %v1262, 1.442695
        %v1264 = vpow.pop %v1263
        %v1265 = vadd.f32 %v1264, 1.0
        %v1266 = vrcp.pop %v1265
        %v1267 = vmul.f32 1.0, %v1266
        %v1268 = vtanh.pop %v1260
        %1270 = vrot.lane.b32.xlu0 %v1261, 32
        %v1271 = vpop.permute.xlu0 %1270
        %v1273 = vmul.f32 %v1267, %v1271
        %1275 = vrot.lane.b32.xlu0 %v1268, 64
        %v1276 = vpop.permute.xlu0 %1275
        %v1278 = vmul.f32 %v1267, %v1276
        %1280 = vrot.lane.b32.xlu0 %v1278, 32
        %v1281 = vpop.permute.xlu0 %1280
        %v1283 = vadd.f32 %v1273, %v1281
        %v1284 = vtanh.pop %v1283
        %1286 = vrot.lane.b32.xlu0 %v1284, 64
        %v1287 = vpop.permute.xlu0 %1286
        %v1289 = vmul.f32 %v1267, %v1287
        %1291 = vrot.lane.b32.xlu0 %v1289, 32
        %v1292 = vpop.permute.xlu0 %1291
        %1294 = vst.msk [vmem:[#allocation4] sm:$0x3] %vm560, %v1292
        %1296 = vrot.lane.b32.xlu0 %v1283, 96
        %v1297 = vpop.permute.xlu0 %1296
        %1299 = vst.msk [vmem:[#allocation5] sm:$0x3] %vm560, %v1297
        %1300 = vst.msk [vmem:[%s444] sm:$0x3] %vm560, %v1292
        %p1301 = scmp.eq.s32.totalorder %s34, 1
        // Predicated region
        $region73: #{tpu_custom_call.1} parent=47 // pred_check
          %p1302 = pneg %p1301
        $region74: #{tpu_custom_call.1} parent=47 // pred_check_branch
          %1304 = sbr.rel (%p1302) target = $region76
        $region75: #{tpu_custom_call.1} parent=47 // pred_region
          %v1305 = vld [vmem:[#allocation2] sm:$0x3]
          %v1306 = vpack.c.bf16 %v1305, %v1305
          %v1307 = vld [vmem:[#allocation14] sm:$0xf]
          %v1308 = vld [vmem:[#allocation14 + $0x4] sm:$0xf]
          %v1309 = vld [vmem:[#allocation14 + $0x8] sm:$0xf]
          %v1310 = vld [vmem:[#allocation14 + $0xc] sm:$0xf]
          %v1311 = vld [vmem:[#allocation4] sm:$0x3]
          %v1312 = vpack.c.bf16 %v1311, %v1311
          %v1313 = vld [vmem:[%s5] sm:$0xf]
          %v1314 = vld [vmem:[%s5 + $0x4] sm:$0xf]
          %v1315 = vld [vmem:[%s5 + $0x8] sm:$0xf]
          %v1316 = vld [vmem:[%s5 + $0xc] sm:$0xf]
          %v1321 = vunpack.c.l.b16 %v1313
          %v1322 = vunpack.c.l.b16 %v1314
          %v1323 = vunpack.c.l.b16 %v1315
          %v1324 = vunpack.c.l.b16 %v1316
          %v1325 = vpack.c.b16 %v1322, %v1321
          %v1326 = vpack.c.b16 %v1324, %v1323
          %v1330 = vsel %vm482, %v1312, 0
          %1332 = vmatprep.subr.bf16.mxu0 0
          %1333 = vmatpush1.bf16.msra.mxu0 %v1325
          %1334 = vmatprep.subr.bf16.mxu0 0
          %1335 = vmatpush1.bf16.msra.mxu0 %v1326
          %1336 = vmatprep.subr.bf16.mxu0 0
          %1337 = vmatpush1.bf16.msra.mxu0 0
          %1338 = vmatprep.subr.bf16.mxu0 0
          %1339 = vmatpush1.bf16.msra.mxu0 0
          %1340 = vmatprep.subr.bf16.mxu0 0
          %1341 = vmatpush1.bf16.msra.mxu0 0
          %1342 = vmatprep.subr.bf16.mxu0 0
          %1343 = vmatpush1.bf16.msra.mxu0 0
          %1344 = vmatprep.subr.bf16.mxu0 0
          %1345 = vmatpush1.bf16.msra.mxu0 0
          %1346 = vmatprep.subr.bf16.mxu0 0
          %1347 = vmatpush1.bf16.msra.mxu0 0
          %1348 = vmatprep.subr.bf16.mxu0 0
          %1349 = vmatpush1.bf16.msra.mxu0 0
          %1350 = vmatprep.subr.bf16.mxu0 0
          %1351 = vmatpush1.bf16.msra.mxu0 0
          %1352 = vmatprep.subr.bf16.mxu0 0
          %1353 = vmatpush1.bf16.msra.mxu0 0
          %1354 = vmatprep.subr.bf16.mxu0 0
          %1355 = vmatpush1.bf16.msra.mxu0 0
          %1356 = vmatprep.subr.bf16.mxu0 0
          %1357 = vmatpush1.bf16.msra.mxu0 0
          %1358 = vmatprep.subr.bf16.mxu0 0
          %1359 = vmatpush1.bf16.msra.mxu0 0
          %1360 = vmatprep.subr.bf16.mxu0 0
          %1361 = vmatpush1.bf16.msra.mxu0 0
          %1362 = vmatprep.subr.bf16.mxu0 0
          %1363 = vmatpush1.bf16.msra.mxu0 0
          %1364 = vmatprep.mubr.bf16.mxu0 0
          %1365 = vmatmul.mubr.bf16.gmra.mrb[0].mxu0 %v1330
          %v1366 = vpop.f32.mrb[0].mxu0
          %v1367 = vadd.f32 0.0, %v1366
          %v1368 = vpop.f32.mrb[0].mxu0
          %v1369 = vpop.f32.mrb[0].mxu0
          %v1370 = vpop.f32.mrb[0].mxu0
          %1371 = vdwg.mxu0
          %v1376 = vunpack.c.l.b16 %v1307
          %v1377 = vunpack.c.l.b16 %v1308
          %v1378 = vunpack.c.l.b16 %v1309
          %v1379 = vunpack.c.l.b16 %v1310
          %v1380 = vpack.c.b16 %v1377, %v1376
          %v1381 = vpack.c.b16 %v1379, %v1378
          %v1385 = vsel %vm482, %v1306, 0
          %1387 = vmatprep.subr.bf16.mxu0 0
          %1388 = vmatpush1.bf16.msra.mxu0 %v1380
          %1389 = vmatprep.subr.bf16.mxu0 0
          %1390 = vmatpush1.bf16.msra.mxu0 %v1381
          %1391 = vmatprep.subr.bf16.mxu0 0
          %1392 = vmatpush1.bf16.msra.mxu0 0
          %1393 = vmatprep.subr.bf16.mxu0 0
          %1394 = vmatpush1.bf16.msra.mxu0 0
          %1395 = vmatprep.subr.bf16.mxu0 0
          %1396 = vmatpush1.bf16.msra.mxu0 0
          %1397 = vmatprep.subr.bf16.mxu0 0
          %1398 = vmatpush1.bf16.msra.mxu0 0
          %1399 = vmatprep.subr.bf16.mxu0 0
          %1400 = vmatpush1.bf16.msra.mxu0 0
          %1401 = vmatprep.subr.bf16.mxu0 0
          %1402 = vmatpush1.bf16.msra.mxu0 0
          %1403 = vmatprep.subr.bf16.mxu0 0
          %1404 = vmatpush1.bf16.msra.mxu0 0
          %1405 = vmatprep.subr.bf16.mxu0 0
          %1406 = vmatpush1.bf16.msra.mxu0 0
          %1407 = vmatprep.subr.bf16.mxu0 0
          %1408 = vmatpush1.bf16.msra.mxu0 0
          %1409 = vmatprep.subr.bf16.mxu0 0
          %1410 = vmatpush1.bf16.msra.mxu0 0
          %1411 = vmatprep.subr.bf16.mxu0 0
          %1412 = vmatpush1.bf16.msra.mxu0 0
          %1413 = vmatprep.subr.bf16.mxu0 0
          %1414 = vmatpush1.bf16.msra.mxu0 0
          %1415 = vmatprep.subr.bf16.mxu0 0
          %1416 = vmatpush1.bf16.msra.mxu0 0
          %1417 = vmatprep.subr.bf16.mxu0 0
          %1418 = vmatpush1.bf16.msra.mxu0 0
          %1419 = vmatprep.mubr.bf16.mxu0 0
          %1420 = vmatmul.mubr.bf16.gmra.mrb[0].mxu0 %v1385
          %v1421 = vpop.f32.mrb[0].mxu0
          %v1422 = vadd.f32 %v1367, %v1421
          %v1423 = vpop.f32.mrb[0].mxu0
          %v1424 = vpop.f32.mrb[0].mxu0
          %v1425 = vpop.f32.mrb[0].mxu0
          %1426 = vdwg.mxu0
          %v1427 = vld [vmem:[%s6] sm:$0x1]
          %v1429 = vlaneseq
          %v1430 = vshrl.u32 %v1429, 7
          %v1431 = vsub.s32 0, %v1430
          %v1432 = vrot.slane %v1427, %v1431
          %v1434 = vadd.f32 %v1422, %v1432
          %1435 = vst [vmem:[#allocation18] sm:$0x3] %v1434
        $region76: #{tpu_custom_call.1} parent=47 // pred_fallthru
          _
        %s1436 = sand.u32 %s201, 1
        %s1437 = scalar_lea.sflag [#allocation8], %s1436
        %s1438 = sand.u32 %s201, 1
        %s1439 = smul.addr %s1438, 8
        %s1440 = scalar_lea.vmem [#allocation15], %s1439
        %s1441 = sand.u32 %s34, 1
        %s1442 = scalar_lea.sflag [#allocation17], %s1441
        %s1443 = sand.u32 %s229, 1
        %s1444 = smul.addr %s1443, 8
        %s1445 = scalar_lea.vmem [#allocation16], %s1444
        // Predicated region
        $region77: #{tpu_custom_call.1} parent=47 // pred_check
          %p1446 = pneg %p211
        $region78: #{tpu_custom_call.1} parent=47 // pred_check_branch
          %1448 = sbr.rel (%p1446) target = $region80
        $region79: #{tpu_custom_call.1} parent=47 // pred_region
          %s1449 = smul.u32 4, %s34
          %s1451 = ssub.s32 128, 128
          %1452 = vsyncadd %s1437, %s1451
          %s1453 = smul.addr %s1449, 32
          %s1454 = scalar_lea.hbm %s7, %s1453
          %s1455 = sshll.u32 %s1440, 4
          %s1456 = int_to_ptr.vmem [resolvable:$true] %s1455
          %1461 = dma.vmem_to_hbm [thread:$0]  %s1456, 128, %s1454, %s1437, 32, 32, 2
        $region80: #{tpu_custom_call.1} parent=47 // pred_fallthru
          _
        // Predicated region
        $region81: #{tpu_custom_call.1} parent=47 // pred_check
          %p1462 = pneg %p239
        $region82: #{tpu_custom_call.1} parent=47 // pred_check_branch
          %1464 = sbr.rel (%p1462) target = $region84
        $region83: #{tpu_custom_call.1} parent=47 // pred_region
          %s1465 = ssub.s32 1, %s34
          %s1466 = smul.u32 4, %s1465
          %s1468 = ssub.s32 128, 128
          %1469 = vsyncadd %s1442, %s1468
          %s1470 = smul.addr %s1466, 32
          %s1471 = scalar_lea.hbm %s8, %s1470
          %s1472 = sshll.u32 %s1445, 4
          %s1473 = int_to_ptr.vmem [resolvable:$true] %s1472
          %1478 = dma.vmem_to_hbm [thread:$0]  %s1473, 128, %s1471, %s1442, 32, 32, 2
        $region84: #{tpu_custom_call.1} parent=47 // pred_fallthru
          _
        // Predicated region
        $region85: #{tpu_custom_call.1} parent=47 // pred_check
          %p1479 = pneg %p260
        $region86: #{tpu_custom_call.1} parent=47 // pred_check_branch
          %1481 = sbr.rel (%p1479) target = $region88
        $region87: #{tpu_custom_call.1} parent=47 // pred_region
          %s1483 = ssub.s32 32, 32
          %1484 = vsyncadd [#allocation17], %s1483
          %s1486 = sshll.u32 [#allocation18], 4
          %s1487 = int_to_ptr.vmem [resolvable:$true] %s1486
          %1489 = dma.vmem_to_hbm [thread:$0]  %s1487, 32, %s9, [#allocation17]
        $region88: #{tpu_custom_call.1} parent=47 // pred_fallthru
          _
        // Predicated region
        $region89: #{tpu_custom_call.1} parent=47 // pred_check
          %p1490 = pneg %p260
        $region90: #{tpu_custom_call.1} parent=47 // pred_check_branch
          %1492 = sbr.rel (%p1490) target = $region92
        $region91: #{tpu_custom_call.1} parent=47 // pred_region
          %1493 = dma.done [#allocation17], 32
        $region92: #{tpu_custom_call.1} parent=47 // pred_fallthru
          _
      $region48: #{tpu_custom_call.1} parent=5 // pred_fallthru
        _
      %p1494 = scmp.le.s32.totalorder 2, %s29
      // Predicated region
      $region93: #{tpu_custom_call.1} parent=5 // pred_check
        %p1495 = pneg %p1494
      $region94: #{tpu_custom_call.1} parent=5 // pred_check_branch
        %1497 = sbr.rel (%p1495) target = $region96
      $region95: #{tpu_custom_call.1} parent=5 // pred_region
        %s1498 = ssub.s32 %s29, 2
        // Predicated region
        $region97: #{tpu_custom_call.1} parent=95 // pred_check
          %p1499 = pneg %p217
        $region98: #{tpu_custom_call.1} parent=95 // pred_check_branch
          %1501 = sbr.rel (%p1499) target = $region100
        $region99: #{tpu_custom_call.1} parent=95 // pred_region
          %s1502 = sand.u32 %s202, 1
          %s1503 = scalar_lea.sflag [#allocation8], %s1502
          %s1504 = sand.u32 %s202, 1
          %s1505 = smul.addr %s1504, 8
          %s1506 = scalar_lea.vmem [#allocation15], %s1505
          %1507 = dma.done %s1503, 128
        $region100: #{tpu_custom_call.1} parent=95 // pred_fallthru
          _
        // Predicated region
        $region101: #{tpu_custom_call.1} parent=95 // pred_check
          %p1508 = pneg %p245
        $region102: #{tpu_custom_call.1} parent=95 // pred_check_branch
          %1510 = sbr.rel (%p1508) target = $region104
        $region103: #{tpu_custom_call.1} parent=95 // pred_region
          %s1511 = sand.u32 %s35, 1
          %s1512 = scalar_lea.sflag [#allocation17], %s1511
          %s1513 = sand.u32 %s230, 1
          %s1514 = smul.addr %s1513, 8
          %s1515 = scalar_lea.vmem [#allocation16], %s1514
          %1516 = dma.done %s1512, 128
        $region104: #{tpu_custom_call.1} parent=95 // pred_fallthru
          _
      $region96: #{tpu_custom_call.1} parent=5 // pred_fallthru
        _
    $region6: #{tpu_custom_call.1} parent=1 // loop_footer
      %s33 = sadd.s32 1, %s29
    $region7: #{tpu_custom_call.1} parent=1 // loop_footer_branch
      %28 = sbr.rel target = $region3
    $region8: #{tpu_custom_call.1} parent=1 // loop_exit
      _
    %1517 = vsyncpa [#allocation7], 1
    %s1518 = scalar_lea.sflag [#allocation7], 1
    %1519 = vsyncpa %s1518, 1
    %1520 = vsyncpa [#allocation10], 1
    %s1521 = scalar_lea.sflag [#allocation10], 1
    %1522 = vsyncpa %s1521, 1
    %1523 = vsyncpa [#allocation13], 1
    %1524 = vsyncpa [#allocation8], 1
    %s1525 = scalar_lea.sflag [#allocation8], 1
    %1526 = vsyncpa %s1525, 1
    %1527 = vsyncpa [#allocation17], 1
    %s1528 = scalar_lea.sflag [#allocation17], 1
    %1529 = vsyncpa %s1528, 1

</llo_original>
